<compile_context>
chip_gen: v7x
topology: tpu7x:2x2x1
jax: 0.10.0
libtpu: 0.0.40
codegen_flags: <defaults>
</compile_context>

<pallas_src>
import functools
import math

import jax
import jax.numpy as jnp
from jax.experimental import pallas as pl
from jax.experimental.pallas import tpu as pltpu

H1, H2, H3 = 200, 100, 1     # module hidden widths
H1P, H2P = 256, 128          # lane-padded widths (multiples of 128)


# --------------------------------------------------------------------------- kernels

def _layer1_folded_kernel(a_ref, xw1_ref, b1_ref, w2_ref,
                          gc1_ref, hw2_ref, *, tk, b_resident):
    """gc1 = A @ (X @ W1) + b1 ; hw2 = relu(gc1) @ W2.

    Grid = (row tile i, A-column reduction tile k), k last. gc1_ref doubles as the f32
    accumulator (output-resident across k). XW1 is bf16 and 256 lanes wide so every MXU
    push on v6e/v7x fills the array. If `b_resident`, xw1_ref holds the full [n_pad, 256]
    operand in VMEM and we slice the current k-slab out of it."""
    k = pl.program_id(1)

    @pl.when(k == 0)
    def _():
        gc1_ref[...] = jnp.zeros_like(gc1_ref)

    if b_resident:
        xw1 = xw1_ref[pl.ds(pl.multiple_of(k * tk, tk), tk), :]
    else:
        xw1 = xw1_ref[...]
    gc1_ref[...] += jnp.dot(a_ref[...], xw1, preferred_element_type=jnp.float32)

    @pl.when(k == pl.num_programs(1) - 1)
    def _():
        gc1 = gc1_ref[...] + b1_ref[...]
        gc1_ref[...] = gc1
        # TODO(synk): F.dropout with training=True would need pltpu.prng_seed +
        # pltpu.prng_random_bits masking and 1/(1-p) scaling; eval-mode identity here.
        h = jnp.maximum(gc1, 0.0).astype(jnp.bfloat16)        # ReLU, bf16 for native MXU rate
        hw2_ref[...] = jnp.dot(h, w2_ref[...],
                               preferred_element_type=jnp.float32).astype(hw2_ref.dtype)


def _layer1_reassoc_kernel(a_ref, x_ref, w1_ref, b1_ref, w2_ref,
                           gc1_ref, hw2_ref, acc_ref, *, tk, b_resident):
    """v5e variant: gc1 = (A @ X) @ W1 + b1 with a narrow (tm, F) f32 accumulator so the
    N^2-cost matmul stays F(=32) lanes wide (memory-bound regime on the 128-wide MXU)."""
    k = pl.program_id(1)

    @pl.when(k == 0)
    def _():
        acc_ref[...] = jnp.zeros_like(acc_ref)

    if b_resident:
        x = x_ref[pl.ds(pl.multiple_of(k * tk, tk), tk), :]
    else:
        x = x_ref[...]
    acc_ref[...] += jnp.dot(a_ref[...], x, preferred_element_type=jnp.float32)

    @pl.when(k == pl.num_programs(1) - 1)
    def _():
        gc1 = jnp.dot(acc_ref[...].astype(jnp.bfloat16), w1_ref[...],
                      preferred_element_type=jnp.float32) + b1_ref[...]
        gc1_ref[...] = gc1
        h = jnp.maximum(gc1, 0.0).astype(jnp.bfloat16)
        hw2_ref[...] = jnp.dot(h, w2_ref[...],
                               preferred_element_type=jnp.float32).astype(hw2_ref.dtype)


def _layer2_kernel(a_ref, hw2_ref, b2_ref, gc4_ref, *, tk, b_resident):
    """gc4 = A @ (relu(gc1) @ W2) + b2, accumulated directly into the f32 output."""
    k = pl.program_id(1)

    @pl.when(k == 0)
    def _():
        gc4_ref[...] = jnp.zeros_like(gc4_ref)

    if b_resident:
        hw2 = hw2_ref[pl.ds(pl.multiple_of(k * tk, tk), tk), :]
    else:
        hw2 = hw2_ref[...]
    gc4_ref[...] += jnp.dot(a_ref[...], hw2, preferred_element_type=jnp.float32)

    @pl.when(k == pl.num_programs(1) - 1)
    def _():
        gc4_ref[...] += b2_ref[...]


# --------------------------------------------------------------------------- helpers

def _round_up(v, m):
    return ((v + m - 1) // m) * m


def _tile_plan(n, tm, tk):
    """Clip tiles to the (128-rounded) node count and return (n_pad, tm, tk)."""
    n128 = _round_up(n, 128)
    tm = max(128, min(tm, n128))
    tk = max(128, min(tk, n128))
    n_pad = _round_up(n128, math.lcm(tm, tk))
    return n_pad, tm, tk


def padded_num_nodes(n, tm=512, tk=256):
    """Padded node count the kernel will use; build A directly at this size."""
    return _tile_plan(n, tm, tk)[0]


def _mxu_is_256_wide():
    """v6e / v7x have 256-wide MXUs (fold W1 into X); v2-v5 are 128-wide."""
    try:
        kind = jax.devices()[0].device_kind.lower()
    except Exception:
        return True
    return not any(t in kind for t in ("v2", "v3", "v4", "v5"))


def _pad_cols(w, to):
    pad = to - w.shape[1]
    return jnp.pad(w, ((0, 0), (0, pad))) if pad else w


def _pad_rows(w, to):
    pad = to - w.shape[0]
    return jnp.pad(w, ((0, pad), (0, 0))) if pad else w


# --------------------------------------------------------------------------- wrapper

def gcn_net_forward(a_norm, x, params, *, tm=512, tk=256, fold_w1=None,
                    resident_bytes=6 * 1024 * 1024):
    """Fused GCN forward. Returns (gc1, gc2, gc3, gc4, head) like the PyTorch Net.

    a_norm: preferably the pre-padded bf16 [n_pad, n_pad] matrix from build_norm_adj
    (avoids an extra N^2 pad + cast pass); an unpadded f32 matrix also works.
    """
    n, f = x.shape
    w1, b1, w2, b2, w3, b3 = params
    n_pad, tm, tk = _tile_plan(n, tm, tk)

    if fold_w1 is None:
        fold_w1 = _mxu_is_256_wide()

    # Lane-pad hidden widths (zero pads keep the math exact; sliced back below).
    w1p = _pad_cols(w1, H1P)                                     # [F, 256] f32
    b1p = _pad_cols(b1, H1P)                                     # [1, 256] f32
    w2p = _pad_cols(_pad_rows(w2, H1P), H2P).astype(jnp.bfloat16)  # [256, 128] bf16
    b2p = _pad_cols(b2, H2P)                                     # [1, 128] f32

    # A: prefer pre-padded bf16 straight from build_norm_adj (no extra N^2 passes).
    if a_norm.shape != (n_pad, n_pad):
        pr = n_pad - a_norm.shape[0]
        pc = n_pad - a_norm.shape[1]
        a_norm = jnp.pad(a_norm, ((0, pr), (0, pc)))
    a_bf = a_norm if a_norm.dtype == jnp.bfloat16 else a_norm.astype(jnp.bfloat16)

    x_pad = jnp.pad(x, ((0, n_pad - n), (0, 0)))                 # [n_pad, F] f32 (tiny)

    grid = (n_pad // tm, n_pad // tk)
    dims = ("parallel", "arbitrary")   # row tiles across TCs; reduction axis last

    def b_operand_spec(width, elem_bytes):
        """Full-residency BlockSpec when the k-slab operand fits (2x for double buffer)."""
        resident = 2 * n_pad * width * elem_bytes <= resident_bytes
        if resident:
            return pl.BlockSpec((n_pad, width), lambda i, k: (0, 0)), True
        return pl.BlockSpec((tk, width), lambda i, k: (k, 0)), False

    # --- pass 1: gc1 = conv1(x) ; hw2 = relu(gc1) @ W2 -----------------------------
    if fold_w1:
        xw1 = (x_pad @ w1p).astype(jnp.bfloat16)                 # [n_pad, 256] (trivial)
        b_spec, b_res = b_operand_spec(H1P, 2)
        kern1 = functools.partial(_layer1_folded_kernel, tk=tk, b_resident=b_res)
        in_specs1 = [
            pl.BlockSpec((tm, tk), lambda i, k: (i, k)),         # A tile
            b_spec,                                              # XW1 (resident or k-slab)
            pl.BlockSpec((1, H1P), lambda i, k: (0, 0)),         # b1
            pl.BlockSpec((H1P, H2P), lambda i, k: (0, 0)),       # W2 (resident)
        ]
        operands1 = (a_bf, xw1, b1p, w2p)
        scratch1 = []
    else:
        x_bf = x_pad.astype(jnp.bfloat16)
        b_spec, b_res = b_operand_spec(f, 2)
        kern1 = functools.partial(_layer1_reassoc_kernel, tk=tk, b_resident=b_res)
        in_specs1 = [
            pl.BlockSpec((tm, tk), lambda i, k: (i, k)),         # A tile
            b_spec,                                              # X (resident or k-slab)
            pl.BlockSpec((f, H1P), lambda i, k: (0, 0)),         # W1 (resident)
            pl.BlockSpec((1, H1P), lambda i, k: (0, 0)),         # b1
            pl.BlockSpec((H1P, H2P), lambda i, k: (0, 0)),       # W2 (resident)
        ]
        operands1 = (a_bf, x_bf, w1p.astype(jnp.bfloat16), b1p, w2p)
        scratch1 = [pltpu.VMEM((tm, f), jnp.float32)]

    gc1_pad, hw2 = pl.pallas_call(
        kern1,
        out_shape=(jax.ShapeDtypeStruct((n_pad, H1P), jnp.float32),
                   jax.ShapeDtypeStruct((n_pad, H2P), jnp.bfloat16)),
        grid_spec=pltpu.PrefetchScalarGridSpec(
            num_scalar_prefetch=0, grid=grid,
            in_specs=in_specs1,
            out_specs=(pl.BlockSpec((tm, H1P), lambda i, k: (i, 0)),   # gc1 (f32 accumulator)
                       pl.BlockSpec((tm, H2P), lambda i, k: (i, 0))),  # relu(gc1) @ W2
            scratch_shapes=scratch1),
        compiler_params=pltpu.CompilerParams(dimension_semantics=dims),
    )(*operands1)

    # --- pass 2: gc4 = A @ hw2 + b2 -------------------------------------------------
    b_spec2, b_res2 = b_operand_spec(H2P, 2)
    gc4_pad = pl.pallas_call(
        functools.partial(_layer2_kernel, tk=tk, b_resident=b_res2),
        out_shape=jax.ShapeDtypeStruct((n_pad, H2P), jnp.float32),
        grid_spec=pltpu.PrefetchScalarGridSpec(
            num_scalar_prefetch=0, grid=grid,
            in_specs=[
                pl.BlockSpec((tm, tk), lambda i, k: (i, k)),     # A tile
                b_spec2,                                         # hw2 (resident or k-slab)
                pl.BlockSpec((1, H2P), lambda i, k: (0, 0)),     # b2
            ],
            out_specs=pl.BlockSpec((tm, H2P), lambda i, k: (i, 0)),   # gc4 (f32 accumulator)
            scratch_shapes=[]),
        compiler_params=pltpu.CompilerParams(dimension_semantics=dims),
    )(a_bf, hw2, b2p)

    gc1 = gc1_pad[:n, :H1]
    gc2 = jnp.maximum(gc1, 0.0)        # recomputed (cheap) instead of a kernel output
    gc3 = gc2                          # dropout: eval-mode identity
    gc4 = gc4_pad[:n, :H2]
    head = gc4 @ w3 + b3               # Linear(100,1) head: trivial XLA matmul (no (tm,1) masked stores)
    return gc1, gc2, gc3, gc4, head


# --------------------------------------------------------------------------- glue

def build_norm_adj(edge_index, num_nodes, n_pad=None, dtype=jnp.bfloat16):
    """Dense D^-1/2 (A + I) D^-1/2 from a [2, E] edge_index, built directly at the padded
    size and target dtype so the kernel wrapper never re-pads or re-casts an N^2 array."""
    if n_pad is None:
        n_pad = num_nodes
    src, dst = edge_index[0], edge_index[1]
    a = jnp.zeros((n_pad, n_pad), jnp.float32)
    a = a.at[dst, src].set(1.0)                     # message src -> dst
    idx = jnp.arange(num_nodes)
    a = a.at[idx, idx].set(1.0)                     # self loops (padded rows stay zero)
    deg = a.sum(axis=1)
    d = jnp.where(deg > 0, 1.0 / jnp.sqrt(deg), 0.0)
    return (d[:, None] * a * d[None, :]).astype(dtype)


def init_params(key, num_node_features, h1=H1, h2=H2, h3=H3):
    ks = jax.random.split(key, 3)

    def glorot(k, fan_in, fan_out):
        lim = jnp.sqrt(6.0 / (fan_in + fan_out))
        return jax.random.uniform(k, (fan_in, fan_out), jnp.float32, -lim, lim)

    w1 = glorot(ks[0], num_node_features, h1); b1 = jnp.zeros((1, h1), jnp.float32)
    w2 = glorot(ks[1], h1, h2);                b2 = jnp.zeros((1, h2), jnp.float32)
    w3 = glorot(ks[2], h2, h3);                b3 = jnp.zeros((1, h3), jnp.float32)
    return (w1, b1, w2, b2, w3, b3)


if __name__ == "__main__":
    key = jax.random.PRNGKey(0)
    k_x, k_p = jax.random.split(key)

    N = 640                # nodes (pads to 768 -> 3x3 grid of 256-tiles)
    F_IN = 32              # data.num_node_features
    TM, TK = 256, 256      # small-graph tiles; production default is tm=512, tk=256

    # Deterministic graph: ring + a few chords (undirected -> both directions).
    ring_src = jnp.arange(N)
    ring_dst = (jnp.arange(N) + 1) % N
    chord_src = jnp.array([0, 3, 5, 8, 40, 100, 150, 7, 300, 412])
    chord_dst = jnp.array([80, 111, 213, 64, 200, 250, 30, 170, 601, 555])
    src = jnp.concatenate([ring_src, ring_dst, chord_src, chord_dst])
    dst = jnp.concatenate([ring_dst, ring_src, chord_dst, chord_src])
    edge_index = jnp.stack([src, dst]).astype(jnp.int32)

    x = jax.random.normal(k_x, (N, F_IN), jnp.float32)
    params = init_params(k_p, F_IN)

    n_pad = padded_num_nodes(N, TM, TK)
    a_bf16 = build_norm_adj(edge_index, N, n_pad=n_pad)          # padded bf16, kernel-ready

    outs = jax.block_until_ready(gcn_net_forward(a_bf16, x, params, tm=TM, tk=TK))
    gc1, gc2, gc3, gc4, head = outs
    assert gc1.shape == (N, H1) and gc2.shape == (N, H1)
    assert gc3.shape == (N, H1) and gc4.shape == (N, H2)
    assert head.shape == (N, H3)

    # Plain-JAX f32 reference (kernel uses bf16 A-matmul operands -> loosened tolerance).
    a_f32 = build_norm_adj(edge_index, N, n_pad=N, dtype=jnp.float32)
    w1, b1, w2, b2, w3, b3 = params
    ref_gc1 = a_f32 @ (x @ w1) + b1
    ref_gc2 = jnp.maximum(ref_gc1, 0.0)
    ref_gc4 = a_f32 @ (ref_gc2 @ w2) + b2
    ref_head = ref_gc4 @ w3 + b3
    assert jnp.allclose(gc1, ref_gc1, rtol=5e-2, atol=5e-2)
    assert jnp.allclose(gc2, ref_gc2, rtol=5e-2, atol=5e-2)
    assert jnp.allclose(gc4, ref_gc4, rtol=5e-2, atol=5e-2)
    assert jnp.allclose(head, ref_head, rtol=5e-2, atol=5e-2)

    # Cross-check the other layer-1 formulation and the streamed (non-resident) k-slab path.
    alt = jax.block_until_ready(gcn_net_forward(
        a_bf16, x, params, tm=TM, tk=TK,
        fold_w1=not _mxu_is_256_wide(), resident_bytes=0))
    assert jnp.allclose(alt[0], ref_gc1, rtol=5e-2, atol=5e-2)
    assert jnp.allclose(alt[3], ref_gc4, rtol=5e-2, atol=5e-2)
    assert jnp.allclose(alt[4], ref_head, rtol=5e-2, atol=5e-2)

    print("KERNEL_OK")
</pallas_src>

<mosaic_0001>
module attributes {stable_mosaic.version = 11 : i64} {
  func.func @_layer1_folded_kernel(%arg0: i32, %arg1: i32, %arg2: memref<256x256xbf16, #tpu.memory_space<vmem>>, %arg3: memref<768x256xbf16, #tpu.memory_space<vmem>>, %arg4: memref<1x256xf32, #tpu.memory_space<vmem>>, %arg5: memref<256x128xbf16, #tpu.memory_space<vmem>>, %arg6: memref<256x256xf32, #tpu.memory_space<vmem>>, %arg7: memref<256x128xbf16, #tpu.memory_space<vmem>>) attributes {dimension_semantics = [#tpu.dimension_semantics<parallel>, #tpu.dimension_semantics<arbitrary>], iteration_bounds = array<i64: 3, 3>, scalar_prefetch = 0 : i64, scratch_operands = 0 : i64, tpu.core_type = #tpu.core_type<tc>, window_params = [{transform_indices = @transform_0, window_bounds = array<i64: 256, 256>}, {pipeline_mode = #tpu.pipeline_mode<synchronous>, transform_indices = @transform_1, window_bounds = array<i64: 768, 256>}, {pipeline_mode = #tpu.pipeline_mode<synchronous>, transform_indices = @transform_2, window_bounds = array<i64: 1, 256>}, {pipeline_mode = #tpu.pipeline_mode<synchronous>, transform_indices = @transform_3, window_bounds = array<i64: 256, 128>}, {transform_indices = @transform_4, window_bounds = array<i64: 256, 256>}, {transform_indices = @transform_5, window_bounds = array<i64: 256, 128>}]} {
    %c0_i32 = arith.constant 0 : i32
    %0 = arith.cmpi eq, %arg1, %c0_i32 : i32
    %1 = arith.extui %0 : i1 to i32
    %c0_i32_0 = arith.constant 0 : i32
    %2 = arith.cmpi ne, %1, %c0_i32_0 : i32
    scf.if %2 {
      %cst_8 = arith.constant 0.000000e+00 : f32
      %15 = vector.broadcast %cst_8 : f32 to vector<256x256xf32>
      %c0_9 = arith.constant 0 : index
      %c0_10 = arith.constant 0 : index
      %16 = vector.load %arg6[%c0_9, %c0_10] : memref<256x256xf32, #tpu.memory_space<vmem>>, vector<256x256xf32>
      tpu.vector_store %arg6[%c0_9, %c0_10], %15 {strides = array<i32>} : memref<256x256xf32, #tpu.memory_space<vmem>>, vector<256x256xf32>,
    } else {
    }
    %c256_i32 = arith.constant 256 : i32
    %3 = arith.muli %arg1, %c256_i32 : i32
    %4 = tpu.assume_multiple %3, 256 : i32
    %5 = arith.index_cast %4 : i32 to index
    %c0 = arith.constant 0 : index
    %6 = vector.load %arg3[%5, %c0] : memref<768x256xbf16, #tpu.memory_space<vmem>>, vector<256x256xbf16>
    %c0_1 = arith.constant 0 : index
    %c0_2 = arith.constant 0 : index
    %7 = vector.load %arg6[%c0_1, %c0_2] : memref<256x256xf32, #tpu.memory_space<vmem>>, vector<256x256xf32>
    %c0_3 = arith.constant 0 : index
    %c0_4 = arith.constant 0 : index
    %8 = vector.load %arg2[%c0_3, %c0_4] : memref<256x256xbf16, #tpu.memory_space<vmem>>, vector<256x256xbf16>
    %cst = arith.constant dense<0.000000e+00> : vector<256x256xf32>
    %9 = tpu.matmul %8, %6, %cst {dimension_numbers = #tpu.dot_dimension_numbers<[1], [0], [0], [1], [0, 0, 1, 1], [], []>} : vector<256x256xbf16>, vector<256x256xbf16>, vector<256x256xf32> -> vector<256x256xf32>
    %10 = arith.addf %7, %9 : vector<256x256xf32>
    %c0_5 = arith.constant 0 : index
    %c0_6 = arith.constant 0 : index
    %11 = vector.load %arg6[%c0_5, %c0_6] : memref<256x256xf32, #tpu.memory_space<vmem>>, vector<256x256xf32>
    tpu.vector_store %arg6[%c0_5, %c0_6], %10 {strides = array<i32>} : memref<256x256xf32, #tpu.memory_space<vmem>>, vector<256x256xf32>,
    %c2_i32 = arith.constant 2 : i32
    %12 = arith.cmpi eq, %arg1, %c2_i32 : i32
    %13 = arith.extui %12 : i1 to i32
    %c0_i32_7 = arith.constant 0 : i32
    %14 = arith.cmpi ne, %13, %c0_i32_7 : i32
    scf.if %14 {
      %c0_8 = arith.constant 0 : index
      %c0_9 = arith.constant 0 : index
      %15 = vector.load %arg6[%c0_8, %c0_9] : memref<256x256xf32, #tpu.memory_space<vmem>>, vector<256x256xf32>
      %c0_10 = arith.constant 0 : index
      %c0_11 = arith.constant 0 : index
      %16 = vector.load %arg4[%c0_10, %c0_11] : memref<1x256xf32, #tpu.memory_space<vmem>>, vector<1x256xf32>
      %17 = vector.broadcast %16 : vector<1x256xf32> to vector<256x256xf32>
      %18 = arith.addf %15, %17 : vector<256x256xf32>
      %c0_12 = arith.constant 0 : index
      %c0_13 = arith.constant 0 : index
      %19 = vector.load %arg6[%c0_12, %c0_13] : memref<256x256xf32, #tpu.memory_space<vmem>>, vector<256x256xf32>
      tpu.vector_store %arg6[%c0_12, %c0_13], %18 {strides = array<i32>} : memref<256x256xf32, #tpu.memory_space<vmem>>, vector<256x256xf32>,
      %cst_14 = arith.constant 0.000000e+00 : f32
      %20 = vector.broadcast %cst_14 : f32 to vector<256x256xf32>
      %21 = arith.maximumf %18, %20 : vector<256x256xf32>
      %22 = arith.truncf %21 : vector<256x256xf32> to vector<256x256xbf16>
      %c0_15 = arith.constant 0 : index
      %c0_16 = arith.constant 0 : index
      %23 = vector.load %arg5[%c0_15, %c0_16] : memref<256x128xbf16, #tpu.memory_space<vmem>>, vector<256x128xbf16>
      %cst_17 = arith.constant dense<0.000000e+00> : vector<256x128xf32>
      %24 = tpu.matmul %22, %23, %cst_17 {dimension_numbers = #tpu.dot_dimension_numbers<[1], [0], [0], [1], [0, 0, 1, 1], [], []>} : vector<256x256xbf16>, vector<256x128xbf16>, vector<256x128xf32> -> vector<256x128xf32>
      %25 = arith.truncf %24 : vector<256x128xf32> to vector<256x128xbf16>
      %c0_18 = arith.constant 0 : index
      %c0_19 = arith.constant 0 : index
      %26 = vector.load %arg7[%c0_18, %c0_19] : memref<256x128xbf16, #tpu.memory_space<vmem>>, vector<256x128xbf16>
      tpu.vector_store %arg7[%c0_18, %c0_19], %25 {strides = array<i32>} : memref<256x128xbf16, #tpu.memory_space<vmem>>, vector<256x128xbf16>,
    } else {
    }
    return
  }
  func.func @transform_0(%arg0: i32, %arg1: i32) -> (i32, i32) {
    %c0_i32 = arith.constant 0 : i32
    return %arg0, %arg1 : i32, i32
  }
  func.func @transform_1(%arg0: i32, %arg1: i32) -> (i32, i32) {
    %c0_i32 = arith.constant 0 : i32
    %c0_i32_0 = arith.constant 0 : i32
    %c0_i32_1 = arith.constant 0 : i32
    return %c0_i32, %c0_i32_0 : i32, i32
  }
  func.func @transform_2(%arg0: i32, %arg1: i32) -> (i32, i32) {
    %c0_i32 = arith.constant 0 : i32
    %c0_i32_0 = arith.constant 0 : i32
    %c0_i32_1 = arith.constant 0 : i32
    return %c0_i32, %c0_i32_0 : i32, i32
  }
  func.func @transform_3(%arg0: i32, %arg1: i32) -> (i32, i32) {
    %c0_i32 = arith.constant 0 : i32
    %c0_i32_0 = arith.constant 0 : i32
    %c0_i32_1 = arith.constant 0 : i32
    return %c0_i32, %c0_i32_0 : i32, i32
  }
  func.func @transform_4(%arg0: i32, %arg1: i32) -> (i32, i32) {
    %c0_i32 = arith.constant 0 : i32
    %c0_i32_0 = arith.constant 0 : i32
    return %arg0, %c0_i32 : i32, i32
  }
  func.func @transform_5(%arg0: i32, %arg1: i32) -> (i32, i32) {
    %c0_i32 = arith.constant 0 : i32
    %c0_i32_0 = arith.constant 0 : i32
    return %arg0, %c0_i32 : i32, i32
  }
}

</mosaic_0001>

<llo_original>
// kernel: tpu_custom_call.1
$region0: #{tpu_custom_call.1}
  #allocation0 [shape = 'u32[]', space=smem, size = 0x4, offset = 0x4, fixed_abs, tag = 'smem constant byte address 0x4 - core index']
  #allocation1 [shape = 'u32[144,128]{1,0:T(1,128)}', space=vmem, size = 0x12000, scoped, tag = 'internal scratch']
  %s0 = inlined_call_operand.hbm [shape: bf16[768,768], index: 0, kind: input, shape index: {}]
  %s1 = inlined_call_operand.hbm [shape: bf16[768,256], index: 1, kind: input, shape index: {}]
  %s2 = inlined_call_operand.hbm [shape: f32[1,256], index: 2, kind: input, shape index: {}]
  %s3 = inlined_call_operand.hbm [shape: bf16[256,128], index: 3, kind: input, shape index: {}]
  %s4 = inlined_call_operand.hbm [shape: f32[768,256], index: 4, kind: output, shape index: {0}]
  %s5 = inlined_call_operand.hbm [shape: bf16[768,128], index: 5, kind: output, shape index: {1}]
  %6 = xla_tuple %s4, %s5
  %s7 = sld [smem:[#allocation0]]
  $region81: #{tpu_custom_call.1} parent=0
    _
  %s9 = ssub.s32 1, %s7
  %s10 = scalar_select 0, %s9, %s7
  $region1: #{tpu_custom_call.1} parent=0
    #allocation2 [shape = 'u8[262144]{0}', space=vmem, size = 0x40000, scoped, tag = 'input window, operand 0']
    #allocation3 [shape = 's32[2]{0}', space=sflag, size = 0x8, scoped, tag = 'scoped memory for tpu_custom_call.1']
    #allocation4 [shape = 's32[2]{0}', space=sflag, size = 0x8, scoped, tag = 'scoped memory for tpu_custom_call.1']
    #allocation5 [shape = 'u8[393216]{0}', space=vmem, size = 0x60000, scoped, tag = 'input window, operand 1, single buffered']
    #allocation6 [shape = 's32[1]{0}', space=sflag, size = 0x4, scoped, tag = 'scoped memory for tpu_custom_call.1']
    #allocation7 [shape = 'u8[1024]{0}', space=vmem, size = 0x400, scoped, tag = 'input window, operand 2, single buffered']
    #allocation8 [shape = 'u8[65536]{0}', space=vmem, size = 0x10000, scoped, tag = 'input window, operand 3, single buffered']
    #allocation9 [shape = 's32[1]{0}', space=sflag, size = 0x4, scoped, tag = 'scoped memory for tpu_custom_call.1']
    #allocation10 [shape = 'u8[524288]{0}', space=vmem, size = 0x80000, scoped, tag = 'output window, operand 0']
    #allocation11 [shape = 'u8[131072]{0}', space=vmem, size = 0x20000, scoped, tag = 'output window, operand 1']
    #allocation12 [shape = 's32[2]{0}', space=sflag, size = 0x8, scoped, tag = 'scoped memory for tpu_custom_call.1']
    %11 = vsyncpa [#allocation3], 0
    %s12 = scalar_lea.sflag [#allocation3], 1
    %13 = vsyncpa %s12, 0
    %14 = vsyncpa [#allocation6], 0
    %15 = vsyncpa [#allocation9], 0
    %16 = vsyncpa [#allocation4], 0
    %s17 = scalar_lea.sflag [#allocation4], 1
    %18 = vsyncpa %s17, 0
    %19 = vsyncpa [#allocation12], 0
    %s20 = scalar_lea.sflag [#allocation12], 1
    %21 = vsyncpa %s20, 0
    loop: start=0, step=1, limit=11
    $region2: #{tpu_custom_call.1} parent=1 // loop_pre_header
      _
    $region3: #{tpu_custom_call.1} parent=1 // loop_header
      %s23 = sphi 0, %s27
      %p24 = scmp.ge.s32.totalorder %s23, 11
      %s30 = sphi 0, %s42
      %s31 = sphi 0, %s38
      %s32 = sphi 0, %s30
      %s33 = sphi 0, %s31
      %s34 = sphi 0, %s32
      %s35 = sphi 0, %s33
      %s47 = sphi 0, %s49
      %s50 = sphi 0, %s47
      %s51 = sphi 0, %s50
      %s67 = sphi 0, %s51
      %s71 = sphi 0, %s71
      %s73 = sphi 0, %s71
      %s74 = sphi 0, %s73
      %s88 = sphi 0, %s74
      %s92 = sphi 0, %s92
      %s94 = sphi 0, %s92
      %s95 = sphi 0, %s94
      %s109 = sphi 0, %s95
      %s113 = sphi 0, %s113
      %s115 = sphi 0, %s113
      %s116 = sphi 0, %s115
      %s130 = sphi 0, %s116
      %s136 = sphi 0, %s138
      %s139 = sphi 0, %s136
      %s140 = sphi 0, %s139
      %s156 = sphi 0, %s140
      %s162 = sphi 0, %s164
      %s165 = sphi 0, %s162
      %s166 = sphi 0, %s165
      %s182 = sphi 0, %s166
    $region4: #{tpu_custom_call.1} parent=1 // loop_header_branch
      %26 = sbr.rel (%p24) target = $region8
    $region5: #{tpu_custom_call.1} parent=1 // loop_body
      %s28 = ssub.s32 %s23, 1
      %s29 = ssub.s32 %s23, 2
      %s36 = sadd.s32 1, %s31
      %p37 = scmp.ge.s32.totalorder %s36, 3
      %s38 = scalar_select %p37, 0, %s36
      %s39 = sadd.s32 1, %s30
      %s40 = scalar_select %p37, %s39, %s30
      %p41 = scmp.ge.s32.totalorder %s40, 3
      %s42 = scalar_select %p41, 0, %s40
      %s43 = ssub.s32 %s30, %s42
      %s44 = ssub.s32 %s31, %s38
      %s45 = sor.u32 %s43, %s44
      %p46 = scmp.eq.s32.totalorder %s45, 0
      %s48 = sadd.s32 %s47, 1
      %s49 = scalar_select %p46, %s47, %s48
      %p52 = pneg %p46
      %p53 = scmp.eq.s32.totalorder %s23, 8
      %p54 = por %p52, %p53
      %p55 = scmp.ne.s32.totalorder %s47, %s50
      %p56 = scmp.eq.s32.totalorder %s23, 0
      %p57 = por %p55, %p56
      %p58 = scmp.ne.s32.totalorder %s47, %s50
      %p59 = scmp.eq.s32.totalorder %s28, 8
      %p60 = por %p58, %p59
      %p61 = scmp.ne.s32.totalorder %s50, %s51
      %p62 = scmp.eq.s32.totalorder %s28, 0
      %p63 = por %p61, %p62
      %p64 = scmp.ne.s32.totalorder %s50, %s51
      %p65 = scmp.eq.s32.totalorder %s29, 8
      %p66 = por %p64, %p65
      %p68 = scmp.ne.s32.totalorder %s51, %s67
      %p69 = scmp.eq.s32.totalorder %s29, 0
      %p70 = por %p68, %p69
      %s72 = sadd.s32 %s71, 1
      %p75 = scmp.eq.s32.totalorder %s23, 8
      %p76 = scmp.ne.s32.totalorder %s71, %s73
      %p77 = scmp.eq.s32.totalorder %s23, 0
      %p78 = por %p76, %p77
      %p79 = scmp.ne.s32.totalorder %s71, %s73
      %p80 = scmp.eq.s32.totalorder %s28, 8
      %p81 = por %p79, %p80
      %p82 = scmp.ne.s32.totalorder %s73, %s74
      %p83 = scmp.eq.s32.totalorder %s28, 0
      %p84 = por %p82, %p83
      %p85 = scmp.ne.s32.totalorder %s73, %s74
      %p86 = scmp.eq.s32.totalorder %s29, 8
      %p87 = por %p85, %p86
      %p89 = scmp.ne.s32.totalorder %s74, %s88
      %p90 = scmp.eq.s32.totalorder %s29, 0
      %p91 = por %p89, %p90
      %s93 = sadd.s32 %s92, 1
      %p96 = scmp.eq.s32.totalorder %s23, 8
      %p97 = scmp.ne.s32.totalorder %s92, %s94
      %p98 = scmp.eq.s32.totalorder %s23, 0
      %p99 = por %p97, %p98
      %p100 = scmp.ne.s32.totalorder %s92, %s94
      %p101 = scmp.eq.s32.totalorder %s28, 8
      %p102 = por %p100, %p101
      %p103 = scmp.ne.s32.totalorder %s94, %s95
      %p104 = scmp.eq.s32.totalorder %s28, 0
      %p105 = por %p103, %p104
      %p106 = scmp.ne.s32.totalorder %s94, %s95
      %p107 = scmp.eq.s32.totalorder %s29, 8
      %p108 = por %p106, %p107
      %p110 = scmp.ne.s32.totalorder %s95, %s109
      %p111 = scmp.eq.s32.totalorder %s29, 0
      %p112 = por %p110, %p111
      %s114 = sadd.s32 %s113, 1
      %p117 = scmp.eq.s32.totalorder %s23, 8
      %p118 = scmp.ne.s32.totalorder %s113, %s115
      %p119 = scmp.eq.s32.totalorder %s23, 0
      %p120 = por %p118, %p119
      %p121 = scmp.ne.s32.totalorder %s113, %s115
      %p122 = scmp.eq.s32.totalorder %s28, 8
      %p123 = por %p121, %p122
      %p124 = scmp.ne.s32.totalorder %s115, %s116
      %p125 = scmp.eq.s32.totalorder %s28, 0
      %p126 = por %p124, %p125
      %p127 = scmp.ne.s32.totalorder %s115, %s116
      %p128 = scmp.eq.s32.totalorder %s29, 8
      %p129 = por %p127, %p128
      %p131 = scmp.ne.s32.totalorder %s116, %s130
      %p132 = scmp.eq.s32.totalorder %s29, 0
      %p133 = por %p131, %p132
      %s134 = ssub.s32 %s30, %s42
      %p135 = scmp.eq.s32.totalorder %s134, 0
      %s137 = sadd.s32 %s136, 1
      %s138 = scalar_select %p135, %s136, %s137
      %p141 = pneg %p135
      %p142 = scmp.eq.s32.totalorder %s23, 8
      %p143 = por %p141, %p142
      %p144 = scmp.ne.s32.totalorder %s136, %s139
      %p145 = scmp.eq.s32.totalorder %s23, 0
      %p146 = por %p144, %p145
      %p147 = scmp.ne.s32.totalorder %s136, %s139
      %p148 = scmp.eq.s32.totalorder %s28, 8
      %p149 = por %p147, %p148
      %p150 = scmp.ne.s32.totalorder %s139, %s140
      %p151 = scmp.eq.s32.totalorder %s28, 0
      %p152 = por %p150, %p151
      %p153 = scmp.ne.s32.totalorder %s139, %s140
      %p154 = scmp.eq.s32.totalorder %s29, 8
      %p155 = por %p153, %p154
      %p157 = scmp.ne.s32.totalorder %s140, %s156
      %p158 = scmp.eq.s32.totalorder %s29, 0
      %p159 = por %p157, %p158
      %s160 = ssub.s32 %s30, %s42
      %p161 = scmp.eq.s32.totalorder %s160, 0
      %s163 = sadd.s32 %s162, 1
      %s164 = scalar_select %p161, %s162, %s163
      %p167 = pneg %p161
      %p168 = scmp.eq.s32.totalorder %s23, 8
      %p169 = por %p167, %p168
      %p170 = scmp.ne.s32.totalorder %s162, %s165
      %p171 = scmp.eq.s32.totalorder %s23, 0
      %p172 = por %p170, %p171
      %p173 = scmp.ne.s32.totalorder %s162, %s165
      %p174 = scmp.eq.s32.totalorder %s28, 8
      %p175 = por %p173, %p174
      %p176 = scmp.ne.s32.totalorder %s165, %s166
      %p177 = scmp.eq.s32.totalorder %s28, 0
      %p178 = por %p176, %p177
      %p179 = scmp.ne.s32.totalorder %s165, %s166
      %p180 = scmp.eq.s32.totalorder %s29, 8
      %p181 = por %p179, %p180
      %p183 = scmp.ne.s32.totalorder %s166, %s182
      %p184 = scmp.eq.s32.totalorder %s29, 0
      %p185 = por %p183, %p184
      %p186 = scmp.le.s32.totalorder 1, %s23
      %p187 = scmp.lt.s32.totalorder %s23, 10
      %p188 = pnand %p186, %p187
      %p189 = pneg %p188
      // Predicated region
      $region9: #{tpu_custom_call.1} parent=5 // pred_check
        _
      $region10: #{tpu_custom_call.1} parent=5 // pred_check_branch
        %191 = sbr.rel (%p188) target = $region12
      $region11: #{tpu_custom_call.1} parent=5 // pred_region
        %s192 = ssub.s32 %s23, 1
        // Predicated region
        $region13: #{tpu_custom_call.1} parent=11 // pred_check
          %p193 = pneg %p84
        $region14: #{tpu_custom_call.1} parent=11 // pred_check_branch
          %195 = sbr.rel (%p193) target = $region16
        $region15: #{tpu_custom_call.1} parent=11 // pred_region
          %s197 = ssub.s32 12288, 12288
          %198 = vsyncadd [#allocation6], %s197
          %s199 = sshll.u32 [#allocation5], 4
          %s200 = int_to_ptr.vmem [resolvable:$true] %s199
          %205 = dma.hbm_to_vmem [thread:$0]  %s1, 12288, %s200, [#allocation6], 128, 128, 8
        $region16: #{tpu_custom_call.1} parent=11 // pred_fallthru
          _
        // Predicated region
        $region17: #{tpu_custom_call.1} parent=11 // pred_check
          %p206 = pneg %p105
        $region18: #{tpu_custom_call.1} parent=11 // pred_check_branch
          %208 = sbr.rel (%p206) target = $region20
        $region19: #{tpu_custom_call.1} parent=11 // pred_region
          %s210 = ssub.s32 32, 32
          %211 = vsyncadd [#allocation6], %s210
          %s213 = sshll.u32 [#allocation7], 4
          %s214 = int_to_ptr.vmem [resolvable:$true] %s213
          %216 = dma.hbm_to_vmem [thread:$0]  %s2, 32, %s214, [#allocation6]
        $region20: #{tpu_custom_call.1} parent=11 // pred_fallthru
          _
        // Predicated region
        $region21: #{tpu_custom_call.1} parent=11 // pred_check
          %p217 = pneg %p126
        $region22: #{tpu_custom_call.1} parent=11 // pred_check_branch
          %219 = sbr.rel (%p217) target = $region24
        $region23: #{tpu_custom_call.1} parent=11 // pred_region
          %s221 = ssub.s32 2048, 2048
          %222 = vsyncadd [#allocation9], %s221
          %s223 = sshll.u32 [#allocation8], 4
          %s224 = int_to_ptr.vmem [resolvable:$true] %s223
          %229 = dma.hbm_to_vmem [thread:$0]  %s3, 2048, %s224, [#allocation9], 64, 64, 4
        $region24: #{tpu_custom_call.1} parent=11 // pred_fallthru
          _
      $region12: #{tpu_custom_call.1} parent=5 // pred_fallthru
        _
      %p230 = scmp.lt.s32.totalorder %s23, 9
      // Predicated region
      $region25: #{tpu_custom_call.1} parent=5 // pred_check
        %p231 = pneg %p230
      $region26: #{tpu_custom_call.1} parent=5 // pred_check_branch
        %233 = sbr.rel (%p231) target = $region28
      $region27: #{tpu_custom_call.1} parent=5 // pred_region
        // Predicated region
        $region29: #{tpu_custom_call.1} parent=27 // pred_check
          %p234 = pneg %p57
        $region30: #{tpu_custom_call.1} parent=27 // pred_check_branch
          %236 = sbr.rel (%p234) target = $region32
        $region31: #{tpu_custom_call.1} parent=27 // pred_region
          %s237 = sand.u32 %s47, 1
          %s238 = scalar_lea.sflag [#allocation3], %s237
          %s239 = sand.u32 %s47, 1
          %s240 = smul.addr %s239, 256
          %s241 = scalar_lea.vmem [#allocation2], %s240
          %s242 = smul.u32 32, %s30
          %s243 = smul.u32 2, %s31
          %s245 = ssub.s32 4096, 4096
          %246 = vsyncadd %s238, %s245
          %s247 = smul.addr %s242, 6
          %s248 = sadd.s32 %s243, %s247
          %s249 = smul.addr %s248, 64
          %s250 = scalar_lea.hbm %s0, %s249
          %s251 = sshll.u32 %s241, 4
          %s252 = int_to_ptr.vmem [resolvable:$true] %s251
          %257 = dma.hbm_to_vmem [thread:$0]  %s250, 4096, %s252, %s238, 384, 128, 8
        $region32: #{tpu_custom_call.1} parent=27 // pred_fallthru
          _
      $region28: #{tpu_custom_call.1} parent=5 // pred_fallthru
        _
      %p258 = scmp.le.s32.totalorder 1, %s23
      %p259 = scmp.lt.s32.totalorder %s23, 10
      %p260 = pnand %p258, %p259
      %p261 = pneg %p260
      // Predicated region
      $region33: #{tpu_custom_call.1} parent=5 // pred_check
        _
      $region34: #{tpu_custom_call.1} parent=5 // pred_check_branch
        %263 = sbr.rel (%p260) target = $region36
      $region35: #{tpu_custom_call.1} parent=5 // pred_region
        %s264 = ssub.s32 %s23, 1
        %s265 = sand.u32 %s50, 1
        %s266 = scalar_lea.sflag [#allocation3], %s265
        %s267 = sand.u32 %s50, 1
        %s268 = smul.addr %s267, 256
        %s269 = scalar_lea.vmem [#allocation2], %s268
        // Predicated region
        $region37: #{tpu_custom_call.1} parent=35 // pred_check
          %p270 = pneg %p63
        $region38: #{tpu_custom_call.1} parent=35 // pred_check_branch
          %272 = sbr.rel (%p270) target = $region40
        $region39: #{tpu_custom_call.1} parent=35 // pred_region
          %273 = dma.done %s266, 4096
        $region40: #{tpu_custom_call.1} parent=35 // pred_fallthru
          _
        // Predicated region
        $region41: #{tpu_custom_call.1} parent=35 // pred_check
          %p274 = pneg %p84
        $region42: #{tpu_custom_call.1} parent=35 // pred_check_branch
          %276 = sbr.rel (%p274) target = $region44
        $region43: #{tpu_custom_call.1} parent=35 // pred_region
          %277 = dma.done [#allocation6], 12288
        $region44: #{tpu_custom_call.1} parent=35 // pred_fallthru
          _
        // Predicated region
        $region45: #{tpu_custom_call.1} parent=35 // pred_check
          %p278 = pneg %p105
        $region46: #{tpu_custom_call.1} parent=35 // pred_check_branch
          %280 = sbr.rel (%p278) target = $region48
        $region47: #{tpu_custom_call.1} parent=35 // pred_region
          %281 = dma.done [#allocation6], 32
        $region48: #{tpu_custom_call.1} parent=35 // pred_fallthru
          _
        // Predicated region
        $region49: #{tpu_custom_call.1} parent=35 // pred_check
          %p282 = pneg %p126
        $region50: #{tpu_custom_call.1} parent=35 // pred_check_branch
          %284 = sbr.rel (%p282) target = $region52
        $region51: #{tpu_custom_call.1} parent=35 // pred_region
          %285 = dma.done [#allocation9], 2048
        $region52: #{tpu_custom_call.1} parent=35 // pred_fallthru
          _
        %s286 = sand.u32 %s50, 1
        %s287 = scalar_lea.sflag [#allocation3], %s286
        %s288 = sand.u32 %s50, 1
        %s289 = smul.addr %s288, 256
        %s290 = scalar_lea.vmem [#allocation2], %s289
        %p291 = pneg %p63
        %p292 = pneg %p60
        %p293 = pneg %p84
        %p294 = pneg %p81
        %p295 = pneg %p105
        %p296 = pneg %p102
        %p297 = pneg %p126
        %p298 = pneg %p123
        %p299 = pneg %p152
        %p300 = pneg %p149
        %s301 = sand.u32 %s139, 1
        %s302 = scalar_lea.sflag [#allocation4], %s301
        %s303 = sand.u32 %s139, 1
        %s304 = smul.addr %s303, 512
        %s305 = scalar_lea.vmem [#allocation10], %s304
        %p306 = pneg %p178
        %p307 = pneg %p175
        %s308 = sand.u32 %s165, 1
        %s309 = scalar_lea.sflag [#allocation12], %s308
        %s310 = sand.u32 %s165, 1
        %s311 = smul.addr %s310, 128
        %s312 = scalar_lea.vmem [#allocation11], %s311
        %s313 = smul.u32 32, %s32
        %s314 = smul.u32 2, %s33
        %s315 = smul.u32 32, %s32
        %s316 = smul.u32 32, %s32
        %p318 = scmp.eq.s32.totalorder %s33, 0
        // Predicated region
        $region53: #{tpu_custom_call.1} parent=35 // pred_check
          %p319 = pneg %p318
        $region54: #{tpu_custom_call.1} parent=35 // pred_check_branch
          %321 = sbr.rel (%p319) target = $region56
        $region55: #{tpu_custom_call.1} parent=35 // pred_region
          %322 = vst [vmem:[%s305] sm:$0xff] 0.0
          %323 = vst [vmem:[%s305 + $0x8] sm:$0xff] 0.0
          %324 = vst [vmem:[%s305 + $0x10] sm:$0xff] 0.0
          %325 = vst [vmem:[%s305 + $0x18] sm:$0xff] 0.0
          %326 = vst [vmem:[%s305 + $0x20] sm:$0xff] 0.0
          %327 = vst [vmem:[%s305 + $0x28] sm:$0xff] 0.0
          %328 = vst [vmem:[%s305 + $0x30] sm:$0xff] 0.0
          %329 = vst [vmem:[%s305 + $0x38] sm:$0xff] 0.0
          %330 = vst [vmem:[%s305 + $0x40] sm:$0xff] 0.0
          %331 = vst [vmem:[%s305 + $0x48] sm:$0xff] 0.0
          %332 = vst [vmem:[%s305 + $0x50] sm:$0xff] 0.0
          %333 = vst [vmem:[%s305 + $0x58] sm:$0xff] 0.0
          %334 = vst [vmem:[%s305 + $0x60] sm:$0xff] 0.0
          %335 = vst [vmem:[%s305 + $0x68] sm:$0xff] 0.0
          %336 = vst [vmem:[%s305 + $0x70] sm:$0xff] 0.0
          %337 = vst [vmem:[%s305 + $0x78] sm:$0xff] 0.0
          %338 = vst [vmem:[%s305 + $0x80] sm:$0xff] 0.0
          %339 = vst [vmem:[%s305 + $0x88] sm:$0xff] 0.0
          %340 = vst [vmem:[%s305 + $0x90] sm:$0xff] 0.0
          %341 = vst [vmem:[%s305 + $0x98] sm:$0xff] 0.0
          %342 = vst [vmem:[%s305 + $0xa0] sm:$0xff] 0.0
          %343 = vst [vmem:[%s305 + $0xa8] sm:$0xff] 0.0
          %344 = vst [vmem:[%s305 + $0xb0] sm:$0xff] 0.0
          %345 = vst [vmem:[%s305 + $0xb8] sm:$0xff] 0.0
          %346 = vst [vmem:[%s305 + $0xc0] sm:$0xff] 0.0
          %347 = vst [vmem:[%s305 + $0xc8] sm:$0xff] 0.0
          %348 = vst [vmem:[%s305 + $0xd0] sm:$0xff] 0.0
          %349 = vst [vmem:[%s305 + $0xd8] sm:$0xff] 0.0
          %350 = vst [vmem:[%s305 + $0xe0] sm:$0xff] 0.0
          %351 = vst [vmem:[%s305 + $0xe8] sm:$0xff] 0.0
          %352 = vst [vmem:[%s305 + $0xf0] sm:$0xff] 0.0
          %353 = vst [vmem:[%s305 + $0xf8] sm:$0xff] 0.0
          %354 = vst [vmem:[%s305 + $0x100] sm:$0xff] 0.0
          %355 = vst [vmem:[%s305 + $0x108] sm:$0xff] 0.0
          %356 = vst [vmem:[%s305 + $0x110] sm:$0xff] 0.0
          %357 = vst [vmem:[%s305 + $0x118] sm:$0xff] 0.0
          %358 = vst [vmem:[%s305 + $0x120] sm:$0xff] 0.0
          %359 = vst [vmem:[%s305 + $0x128] sm:$0xff] 0.0
          %360 = vst [vmem:[%s305 + $0x130] sm:$0xff] 0.0
          %361 = vst [vmem:[%s305 + $0x138] sm:$0xff] 0.0
          %362 = vst [vmem:[%s305 + $0x140] sm:$0xff] 0.0
          %363 = vst [vmem:[%s305 + $0x148] sm:$0xff] 0.0
          %364 = vst [vmem:[%s305 + $0x150] sm:$0xff] 0.0
          %365 = vst [vmem:[%s305 + $0x158] sm:$0xff] 0.0
          %366 = vst [vmem:[%s305 + $0x160] sm:$0xff] 0.0
          %367 = vst [vmem:[%s305 + $0x168] sm:$0xff] 0.0
          %368 = vst [vmem:[%s305 + $0x170] sm:$0xff] 0.0
          %369 = vst [vmem:[%s305 + $0x178] sm:$0xff] 0.0
          %370 = vst [vmem:[%s305 + $0x180] sm:$0xff] 0.0
          %371 = vst [vmem:[%s305 + $0x188] sm:$0xff] 0.0
          %372 = vst [vmem:[%s305 + $0x190] sm:$0xff] 0.0
          %373 = vst [vmem:[%s305 + $0x198] sm:$0xff] 0.0
          %374 = vst [vmem:[%s305 + $0x1a0] sm:$0xff] 0.0
          %375 = vst [vmem:[%s305 + $0x1a8] sm:$0xff] 0.0
          %376 = vst [vmem:[%s305 + $0x1b0] sm:$0xff] 0.0
          %377 = vst [vmem:[%s305 + $0x1b8] sm:$0xff] 0.0
          %378 = vst [vmem:[%s305 + $0x1c0] sm:$0xff] 0.0
          %379 = vst [vmem:[%s305 + $0x1c8] sm:$0xff] 0.0
          %380 = vst [vmem:[%s305 + $0x1d0] sm:$0xff] 0.0
          %381 = vst [vmem:[%s305 + $0x1d8] sm:$0xff] 0.0
          %382 = vst [vmem:[%s305 + $0x1e0] sm:$0xff] 0.0
          %383 = vst [vmem:[%s305 + $0x1e8] sm:$0xff] 0.0
          %384 = vst [vmem:[%s305 + $0x1f0] sm:$0xff] 0.0
          %385 = vst [vmem:[%s305 + $0x1f8] sm:$0xff] 0.0
        $region56: #{tpu_custom_call.1} parent=35 // pred_fallthru
          _
        %s386 = smul.u32 %s33, 256
        %s387 = sshra.s32 %s386, 3
        %s388 = sand.u32 %s386, 7
        %s389 = smul.u32 %s387, 2
        %s390 = smul.addr %s389, 4
        %s391 = scalar_lea.vmem [#allocation5], %s390
        %v392 = vld [vmem:[%s391] sm:$0xff]
        %v393 = vld [vmem:[%s391 + $0x8] sm:$0xff]
        %v394 = vld [vmem:[%s391 + $0x10] sm:$0xff]
        %v395 = vld [vmem:[%s391 + $0x18] sm:$0xff]
        %v396 = vld [vmem:[%s391 + $0x20] sm:$0xff]
        %v397 = vld [vmem:[%s391 + $0x28] sm:$0xff]
        %v398 = vld [vmem:[%s391 + $0x30] sm:$0xff]
        %v399 = vld [vmem:[%s391 + $0x38] sm:$0xff]
        %v400 = vld [vmem:[%s391 + $0x40] sm:$0xff]
        %v401 = vld [vmem:[%s391 + $0x48] sm:$0xff]
        %v402 = vld [vmem:[%s391 + $0x50] sm:$0xff]
        %v403 = vld [vmem:[%s391 + $0x58] sm:$0xff]
        %v404 = vld [vmem:[%s391 + $0x60] sm:$0xff]
        %v405 = vld [vmem:[%s391 + $0x68] sm:$0xff]
        %v406 = vld [vmem:[%s391 + $0x70] sm:$0xff]
        %v407 = vld [vmem:[%s391 + $0x78] sm:$0xff]
        %v408 = vld [vmem:[%s391 + $0x80] sm:$0xff]
        %v409 = vld [vmem:[%s391 + $0x88] sm:$0xff]
        %v410 = vld [vmem:[%s391 + $0x90] sm:$0xff]
        %v411 = vld [vmem:[%s391 + $0x98] sm:$0xff]
        %v412 = vld [vmem:[%s391 + $0xa0] sm:$0xff]
        %v413 = vld [vmem:[%s391 + $0xa8] sm:$0xff]
        %v414 = vld [vmem:[%s391 + $0xb0] sm:$0xff]
        %v415 = vld [vmem:[%s391 + $0xb8] sm:$0xff]
        %v416 = vld [vmem:[%s391 + $0xc0] sm:$0xff]
        %v417 = vld [vmem:[%s391 + $0xc8] sm:$0xff]
        %v418 = vld [vmem:[%s391 + $0xd0] sm:$0xff]
        %v419 = vld [vmem:[%s391 + $0xd8] sm:$0xff]
        %v420 = vld [vmem:[%s391 + $0xe0] sm:$0xff]
        %v421 = vld [vmem:[%s391 + $0xe8] sm:$0xff]
        %v422 = vld [vmem:[%s391 + $0xf0] sm:$0xff]
        %v423 = vld [vmem:[%s391 + $0xf8] sm:$0xff]
        %v424 = vld [vmem:[%s305] sm:$0xff]
        %v425 = vld [vmem:[%s305 + $0x8] sm:$0xff]
        %v426 = vld [vmem:[%s305 + $0x10] sm:$0xff]
        %v427 = vld [vmem:[%s305 + $0x18] sm:$0xff]
        %v428 = vld [vmem:[%s305 + $0x20] sm:$0xff]
        %v429 = vld [vmem:[%s305 + $0x28] sm:$0xff]
        %v430 = vld [vmem:[%s305 + $0x30] sm:$0xff]
        %v431 = vld [vmem:[%s305 + $0x38] sm:$0xff]
        %v432 = vld [vmem:[%s305 + $0x40] sm:$0xff]
        %v433 = vld [vmem:[%s305 + $0x48] sm:$0xff]
        %v434 = vld [vmem:[%s305 + $0x50] sm:$0xff]
        %v435 = vld [vmem:[%s305 + $0x58] sm:$0xff]
        %v436 = vld [vmem:[%s305 + $0x60] sm:$0xff]
        %v437 = vld [vmem:[%s305 + $0x68] sm:$0xff]
        %v438 = vld [vmem:[%s305 + $0x70] sm:$0xff]
        %v439 = vld [vmem:[%s305 + $0x78] sm:$0xff]
        %v440 = vld [vmem:[%s305 + $0x80] sm:$0xff]
        %v441 = vld [vmem:[%s305 + $0x88] sm:$0xff]
        %v442 = vld [vmem:[%s305 + $0x90] sm:$0xff]
        %v443 = vld [vmem:[%s305 + $0x98] sm:$0xff]
        %v444 = vld [vmem:[%s305 + $0xa0] sm:$0xff]
        %v445 = vld [vmem:[%s305 + $0xa8] sm:$0xff]
        %v446 = vld [vmem:[%s305 + $0xb0] sm:$0xff]
        %v447 = vld [vmem:[%s305 + $0xb8] sm:$0xff]
        %v448 = vld [vmem:[%s305 + $0xc0] sm:$0xff]
        %v449 = vld [vmem:[%s305 + $0xc8] sm:$0xff]
        %v450 = vld [vmem:[%s305 + $0xd0] sm:$0xff]
        %v451 = vld [vmem:[%s305 + $0xd8] sm:$0xff]
        %v452 = vld [vmem:[%s305 + $0xe0] sm:$0xff]
        %v453 = vld [vmem:[%s305 + $0xe8] sm:$0xff]
        %v454 = vld [vmem:[%s305 + $0xf0] sm:$0xff]
        %v455 = vld [vmem:[%s305 + $0xf8] sm:$0xff]
        %v456 = vld [vmem:[%s305 + $0x100] sm:$0xff]
        %v457 = vld [vmem:[%s305 + $0x108] sm:$0xff]
        %v458 = vld [vmem:[%s305 + $0x110] sm:$0xff]
        %v459 = vld [vmem:[%s305 + $0x118] sm:$0xff]
        %v460 = vld [vmem:[%s305 + $0x120] sm:$0xff]
        %v461 = vld [vmem:[%s305 + $0x128] sm:$0xff]
        %v462 = vld [vmem:[%s305 + $0x130] sm:$0xff]
        %v463 = vld [vmem:[%s305 + $0x138] sm:$0xff]
        %v464 = vld [vmem:[%s305 + $0x140] sm:$0xff]
        %v465 = vld [vmem:[%s305 + $0x148] sm:$0xff]
        %v466 = vld [vmem:[%s305 + $0x150] sm:$0xff]
        %v467 = vld [vmem:[%s305 + $0x158] sm:$0xff]
        %v468 = vld [vmem:[%s305 + $0x160] sm:$0xff]
        %v469 = vld [vmem:[%s305 + $0x168] sm:$0xff]
        %v470 = vld [vmem:[%s305 + $0x170] sm:$0xff]
        %v471 = vld [vmem:[%s305 + $0x178] sm:$0xff]
        %v472 = vld [vmem:[%s305 + $0x180] sm:$0xff]
        %v473 = vld [vmem:[%s305 + $0x188] sm:$0xff]
        %v474 = vld [vmem:[%s305 + $0x190] sm:$0xff]
        %v475 = vld [vmem:[%s305 + $0x198] sm:$0xff]
        %v476 = vld [vmem:[%s305 + $0x1a0] sm:$0xff]
        %v477 = vld [vmem:[%s305 + $0x1a8] sm:$0xff]
        %v478 = vld [vmem:[%s305 + $0x1b0] sm:$0xff]
        %v479 = vld [vmem:[%s305 + $0x1b8] sm:$0xff]
        %v480 = vld [vmem:[%s305 + $0x1c0] sm:$0xff]
        %v481 = vld [vmem:[%s305 + $0x1c8] sm:$0xff]
        %v482 = vld [vmem:[%s305 + $0x1d0] sm:$0xff]
        %v483 = vld [vmem:[%s305 + $0x1d8] sm:$0xff]
        %v484 = vld [vmem:[%s305 + $0x1e0] sm:$0xff]
        %v485 = vld [vmem:[%s305 + $0x1e8] sm:$0xff]
        %v486 = vld [vmem:[%s305 + $0x1f0] sm:$0xff]
        %v487 = vld [vmem:[%s305 + $0x1f8] sm:$0xff]
        %v488 = vld [vmem:[%s269] sm:$0xff]
        %v489 = vld [vmem:[%s269 + $0x8] sm:$0xff]
        %v490 = vld [vmem:[%s269 + $0x10] sm:$0xff]
        %v491 = vld [vmem:[%s269 + $0x18] sm:$0xff]
        %v492 = vld [vmem:[%s269 + $0x20] sm:$0xff]
        %v493 = vld [vmem:[%s269 + $0x28] sm:$0xff]
        %v494 = vld [vmem:[%s269 + $0x30] sm:$0xff]
        %v495 = vld [vmem:[%s269 + $0x38] sm:$0xff]
        %v496 = vld [vmem:[%s269 + $0x40] sm:$0xff]
        %v497 = vld [vmem:[%s269 + $0x48] sm:$0xff]
        %v498 = vld [vmem:[%s269 + $0x50] sm:$0xff]
        %v499 = vld [vmem:[%s269 + $0x58] sm:$0xff]
        %v500 = vld [vmem:[%s269 + $0x60] sm:$0xff]
        %v501 = vld [vmem:[%s269 + $0x68] sm:$0xff]
        %v502 = vld [vmem:[%s269 + $0x70] sm:$0xff]
        %v503 = vld [vmem:[%s269 + $0x78] sm:$0xff]
        %v504 = vld [vmem:[%s269 + $0x80] sm:$0xff]
        %v505 = vld [vmem:[%s269 + $0x88] sm:$0xff]
        %v506 = vld [vmem:[%s269 + $0x90] sm:$0xff]
        %v507 = vld [vmem:[%s269 + $0x98] sm:$0xff]
        %v508 = vld [vmem:[%s269 + $0xa0] sm:$0xff]
        %v509 = vld [vmem:[%s269 + $0xa8] sm:$0xff]
        %v510 = vld [vmem:[%s269 + $0xb0] sm:$0xff]
        %v511 = vld [vmem:[%s269 + $0xb8] sm:$0xff]
        %v512 = vld [vmem:[%s269 + $0xc0] sm:$0xff]
        %v513 = vld [vmem:[%s269 + $0xc8] sm:$0xff]
        %v514 = vld [vmem:[%s269 + $0xd0] sm:$0xff]
        %v515 = vld [vmem:[%s269 + $0xd8] sm:$0xff]
        %v516 = vld [vmem:[%s269 + $0xe0] sm:$0xff]
        %v517 = vld [vmem:[%s269 + $0xe8] sm:$0xff]
        %v518 = vld [vmem:[%s269 + $0xf0] sm:$0xff]
        %v519 = vld [vmem:[%s269 + $0xf8] sm:$0xff]
        %v552 = vunpack.c.l.b16 %v488
        %v553 = vunpack.c.h.b16 %v488
        %v554 = vunpack.c.l.b16 %v489
        %v555 = vunpack.c.h.b16 %v489
        %v556 = vunpack.c.l.b16 %v490
        %v557 = vunpack.c.h.b16 %v490
        %v558 = vunpack.c.l.b16 %v491
        %v559 = vunpack.c.h.b16 %v491
        %v560 = vunpack.c.l.b16 %v492
        %v561 = vunpack.c.h.b16 %v492
        %v562 = vunpack.c.l.b16 %v493
        %v563 = vunpack.c.h.b16 %v493
        %v564 = vunpack.c.l.b16 %v494
        %v565 = vunpack.c.h.b16 %v494
        %v566 = vunpack.c.l.b16 %v495
        %v567 = vunpack.c.h.b16 %v495
        %v568 = vunpack.c.l.b16 %v496
        %v569 = vunpack.c.h.b16 %v496
        %v570 = vunpack.c.l.b16 %v497
        %v571 = vunpack.c.h.b16 %v497
        %v572 = vunpack.c.l.b16 %v498
        %v573 = vunpack.c.h.b16 %v498
        %v574 = vunpack.c.l.b16 %v499
        %v575 = vunpack.c.h.b16 %v499
        %v576 = vunpack.c.l.b16 %v500
        %v577 = vunpack.c.h.b16 %v500
        %v578 = vunpack.c.l.b16 %v501
        %v579 = vunpack.c.h.b16 %v501
        %v580 = vunpack.c.l.b16 %v502
        %v581 = vunpack.c.h.b16 %v502
        %v582 = vunpack.c.l.b16 %v503
        %v583 = vunpack.c.h.b16 %v503
        %v584 = vunpack.c.l.b16 %v504
        %v585 = vunpack.c.h.b16 %v504
        %v586 = vunpack.c.l.b16 %v505
        %v587 = vunpack.c.h.b16 %v505
        %v588 = vunpack.c.l.b16 %v506
        %v589 = vunpack.c.h.b16 %v506
        %v590 = vunpack.c.l.b16 %v507
        %v591 = vunpack.c.h.b16 %v507
        %v592 = vunpack.c.l.b16 %v508
        %v593 = vunpack.c.h.b16 %v508
        %v594 = vunpack.c.l.b16 %v509
        %v595 = vunpack.c.h.b16 %v509
        %v596 = vunpack.c.l.b16 %v510
        %v597 = vunpack.c.h.b16 %v510
        %v598 = vunpack.c.l.b16 %v511
        %v599 = vunpack.c.h.b16 %v511
        %v600 = vunpack.c.l.b16 %v512
        %v601 = vunpack.c.h.b16 %v512
        %v602 = vunpack.c.l.b16 %v513
        %v603 = vunpack.c.h.b16 %v513
        %v604 = vunpack.c.l.b16 %v514
        %v605 = vunpack.c.h.b16 %v514
        %v606 = vunpack.c.l.b16 %v515
        %v607 = vunpack.c.h.b16 %v515
        %v608 = vunpack.c.l.b16 %v516
        %v609 = vunpack.c.h.b16 %v516
        %v610 = vunpack.c.l.b16 %v517
        %v611 = vunpack.c.h.b16 %v517
        %v612 = vunpack.c.l.b16 %v518
        %v613 = vunpack.c.h.b16 %v518
        %v614 = vunpack.c.l.b16 %v519
        %v615 = vunpack.c.h.b16 %v519
        %v616 = vpack.c.b16 %v554, %v552
        %v617 = vpack.c.b16 %v555, %v553
        %v618 = vpack.c.b16 %v558, %v556
        %v619 = vpack.c.b16 %v559, %v557
        %v620 = vpack.c.b16 %v562, %v560
        %v621 = vpack.c.b16 %v563, %v561
        %v622 = vpack.c.b16 %v566, %v564
        %v623 = vpack.c.b16 %v567, %v565
        %v624 = vpack.c.b16 %v570, %v568
        %v625 = vpack.c.b16 %v571, %v569
        %v626 = vpack.c.b16 %v574, %v572
        %v627 = vpack.c.b16 %v575, %v573
        %v628 = vpack.c.b16 %v578, %v576
        %v629 = vpack.c.b16 %v579, %v577
        %v630 = vpack.c.b16 %v582, %v580
        %v631 = vpack.c.b16 %v583, %v581
        %v632 = vpack.c.b16 %v586, %v584
        %v633 = vpack.c.b16 %v587, %v585
        %v634 = vpack.c.b16 %v590, %v588
        %v635 = vpack.c.b16 %v591, %v589
        %v636 = vpack.c.b16 %v594, %v592
        %v637 = vpack.c.b16 %v595, %v593
        %v638 = vpack.c.b16 %v598, %v596
        %v639 = vpack.c.b16 %v599, %v597
        %v640 = vpack.c.b16 %v602, %v600
        %v641 = vpack.c.b16 %v603, %v601
        %v642 = vpack.c.b16 %v606, %v604
        %v643 = vpack.c.b16 %v607, %v605
        %v644 = vpack.c.b16 %v610, %v608
        %v645 = vpack.c.b16 %v611, %v609
        %v646 = vpack.c.b16 %v614, %v612
        %v647 = vpack.c.b16 %v615, %v613
        %v712 = vunpack.c.l.b16 %v392
        %v713 = vunpack.c.h.b16 %v392
        %v714 = vunpack.c.l.b16 %v393
        %v715 = vunpack.c.h.b16 %v393
        %v716 = vunpack.c.l.b16 %v394
        %v717 = vunpack.c.h.b16 %v394
        %v718 = vunpack.c.l.b16 %v395
        %v719 = vunpack.c.h.b16 %v395
        %v720 = vunpack.c.l.b16 %v396
        %v721 = vunpack.c.h.b16 %v396
        %v722 = vunpack.c.l.b16 %v397
        %v723 = vunpack.c.h.b16 %v397
        %v724 = vunpack.c.l.b16 %v398
        %v725 = vunpack.c.h.b16 %v398
        %v726 = vunpack.c.l.b16 %v399
        %v727 = vunpack.c.h.b16 %v399
        %v728 = vunpack.c.l.b16 %v400
        %v729 = vunpack.c.h.b16 %v400
        %v730 = vunpack.c.l.b16 %v401
        %v731 = vunpack.c.h.b16 %v401
        %v732 = vunpack.c.l.b16 %v402
        %v733 = vunpack.c.h.b16 %v402
        %v734 = vunpack.c.l.b16 %v403
        %v735 = vunpack.c.h.b16 %v403
        %v736 = vunpack.c.l.b16 %v404
        %v737 = vunpack.c.h.b16 %v404
        %v738 = vunpack.c.l.b16 %v405
        %v739 = vunpack.c.h.b16 %v405
        %v740 = vunpack.c.l.b16 %v406
        %v741 = vunpack.c.h.b16 %v406
        %v742 = vunpack.c.l.b16 %v407
        %v743 = vunpack.c.h.b16 %v407
        %v744 = vunpack.c.l.b16 %v408
        %v745 = vunpack.c.h.b16 %v408
        %v746 = vunpack.c.l.b16 %v409
        %v747 = vunpack.c.h.b16 %v409
        %v748 = vunpack.c.l.b16 %v410
        %v749 = vunpack.c.h.b16 %v410
        %v750 = vunpack.c.l.b16 %v411
        %v751 = vunpack.c.h.b16 %v411
        %v752 = vunpack.c.l.b16 %v412
        %v753 = vunpack.c.h.b16 %v412
        %v754 = vunpack.c.l.b16 %v413
        %v755 = vunpack.c.h.b16 %v413
        %v756 = vunpack.c.l.b16 %v414
        %v757 = vunpack.c.h.b16 %v414
        %v758 = vunpack.c.l.b16 %v415
        %v759 = vunpack.c.h.b16 %v415
        %v760 = vunpack.c.l.b16 %v416
        %v761 = vunpack.c.h.b16 %v416
        %v762 = vunpack.c.l.b16 %v417
        %v763 = vunpack.c.h.b16 %v417
        %v764 = vunpack.c.l.b16 %v418
        %v765 = vunpack.c.h.b16 %v418
        %v766 = vunpack.c.l.b16 %v419
        %v767 = vunpack.c.h.b16 %v419
        %v768 = vunpack.c.l.b16 %v420
        %v769 = vunpack.c.h.b16 %v420
        %v770 = vunpack.c.l.b16 %v421
        %v771 = vunpack.c.h.b16 %v421
        %v772 = vunpack.c.l.b16 %v422
        %v773 = vunpack.c.h.b16 %v422
        %v774 = vunpack.c.l.b16 %v423
        %v775 = vunpack.c.h.b16 %v423
        %v776 = vpack.c.b16 %v714, %v712
        %v777 = vpack.c.b16 %v715, %v713
        %v778 = vpack.c.b16 %v718, %v716
        %v779 = vpack.c.b16 %v719, %v717
        %v780 = vpack.c.b16 %v722, %v720
        %v781 = vpack.c.b16 %v723, %v721
        %v782 = vpack.c.b16 %v726, %v724
        %v783 = vpack.c.b16 %v727, %v725
        %v784 = vpack.c.b16 %v730, %v728
        %v785 = vpack.c.b16 %v731, %v729
        %v786 = vpack.c.b16 %v734, %v732
        %v787 = vpack.c.b16 %v735, %v733
        %v788 = vpack.c.b16 %v738, %v736
        %v789 = vpack.c.b16 %v739, %v737
        %v790 = vpack.c.b16 %v742, %v740
        %v791 = vpack.c.b16 %v743, %v741
        %v792 = vpack.c.b16 %v746, %v744
        %v793 = vpack.c.b16 %v747, %v745
        %v794 = vpack.c.b16 %v750, %v748
        %v795 = vpack.c.b16 %v751, %v749
        %v796 = vpack.c.b16 %v754, %v752
        %v797 = vpack.c.b16 %v755, %v753
        %v798 = vpack.c.b16 %v758, %v756
        %v799 = vpack.c.b16 %v759, %v757
        %v800 = vpack.c.b16 %v762, %v760
        %v801 = vpack.c.b16 %v763, %v761
        %v802 = vpack.c.b16 %v766, %v764
        %v803 = vpack.c.b16 %v767, %v765
        %v804 = vpack.c.b16 %v770, %v768
        %v805 = vpack.c.b16 %v771, %v769
        %v806 = vpack.c.b16 %v774, %v772
        %v807 = vpack.c.b16 %v775, %v773
        %840 = vmatprep.subr.bf16.mxu0 %v777
        %841 = vmatpush1.bf16.msra.mxu0 %v776
        %842 = vmatprep.subr.bf16.mxu0 %v779
        %843 = vmatpush1.bf16.msra.mxu0 %v778
        %844 = vmatprep.subr.bf16.mxu0 %v781
        %845 = vmatpush1.bf16.msra.mxu0 %v780
        %846 = vmatprep.subr.bf16.mxu0 %v783
        %847 = vmatpush1.bf16.msra.mxu0 %v782
        %848 = vmatprep.subr.bf16.mxu0 %v785
        %849 = vmatpush1.bf16.msra.mxu0 %v784
        %850 = vmatprep.subr.bf16.mxu0 %v787
        %851 = vmatpush1.bf16.msra.mxu0 %v786
        %852 = vmatprep.subr.bf16.mxu0 %v789
        %853 = vmatpush1.bf16.msra.mxu0 %v788
        %854 = vmatprep.subr.bf16.mxu0 %v791
        %855 = vmatpush1.bf16.msra.mxu0 %v790
        %856 = vmatprep.subr.bf16.mxu0 %v793
        %857 = vmatpush1.bf16.msra.mxu0 %v792
        %858 = vmatprep.subr.bf16.mxu0 %v795
        %859 = vmatpush1.bf16.msra.mxu0 %v794
        %860 = vmatprep.subr.bf16.mxu0 %v797
        %861 = vmatpush1.bf16.msra.mxu0 %v796
        %862 = vmatprep.subr.bf16.mxu0 %v799
        %863 = vmatpush1.bf16.msra.mxu0 %v798
        %864 = vmatprep.subr.bf16.mxu0 %v801
        %865 = vmatpush1.bf16.msra.mxu0 %v800
        %866 = vmatprep.subr.bf16.mxu0 %v803
        %867 = vmatpush1.bf16.msra.mxu0 %v802
        %868 = vmatprep.subr.bf16.mxu0 %v805
        %869 = vmatpush1.bf16.msra.mxu0 %v804
        %870 = vmatprep.subr.bf16.mxu0 %v807
        %871 = vmatpush1.bf16.msra.mxu0 %v806
        %872 = vmatprep.mubr.bf16.mxu0 %v617
        %873 = vmatmul.mubr.bf16.gmra.mrb[0].mxu0 %v616
        %v874 = vpop.f32.mrb[0].mxu0
        %v875 = vadd.f32 0.0, %v874
        %v876 = vpop.f32.mrb[0].mxu0
        %v877 = vadd.f32 0.0, %v876
        %v878 = vpop.f32.mrb[0].mxu0
        %v879 = vadd.f32 0.0, %v878
        %v880 = vpop.f32.mrb[0].mxu0
        %v881 = vadd.f32 0.0, %v880
        %882 = vmatprep.mubr.bf16.mxu0 %v619
        %883 = vmatmul.mubr.bf16.gmra.mrb[0].mxu0 %v618
        %v884 = vpop.f32.mrb[0].mxu0
        %v885 = vadd.f32 0.0, %v884
        %v886 = vpop.f32.mrb[0].mxu0
        %v887 = vadd.f32 0.0, %v886
        %v888 = vpop.f32.mrb[0].mxu0
        %v889 = vadd.f32 0.0, %v888
        %v890 = vpop.f32.mrb[0].mxu0
        %v891 = vadd.f32 0.0, %v890
        %892 = vmatprep.mubr.bf16.mxu0 %v621
        %893 = vmatmul.mubr.bf16.gmra.mrb[0].mxu0 %v620
        %v894 = vpop.f32.mrb[0].mxu0
        %v895 = vadd.f32 0.0, %v894
        %v896 = vpop.f32.mrb[0].mxu0
        %v897 = vadd.f32 0.0, %v896
        %v898 = vpop.f32.mrb[0].mxu0
        %v899 = vadd.f32 0.0, %v898
        %v900 = vpop.f32.mrb[0].mxu0
        %v901 = vadd.f32 0.0, %v900
        %902 = vmatprep.mubr.bf16.mxu0 %v623
        %903 = vmatmul.mubr.bf16.gmra.mrb[0].mxu0 %v622
        %v904 = vpop.f32.mrb[0].mxu0
        %v905 = vadd.f32 0.0, %v904
        %v906 = vpop.f32.mrb[0].mxu0
        %v907 = vadd.f32 0.0, %v906
        %v908 = vpop.f32.mrb[0].mxu0
        %v909 = vadd.f32 0.0, %v908
        %v910 = vpop.f32.mrb[0].mxu0
        %v911 = vadd.f32 0.0, %v910
        %912 = vmatprep.mubr.bf16.mxu0 %v625
        %913 = vmatmul.mubr.bf16.gmra.mrb[0].mxu0 %v624
        %v914 = vpop.f32.mrb[0].mxu0
        %v915 = vadd.f32 0.0, %v914
        %v916 = vpop.f32.mrb[0].mxu0
        %v917 = vadd.f32 0.0, %v916
        %v918 = vpop.f32.mrb[0].mxu0
        %v919 = vadd.f32 0.0, %v918
        %v920 = vpop.f32.mrb[0].mxu0
        %v921 = vadd.f32 0.0, %v920
        %922 = vmatprep.mubr.bf16.mxu0 %v627
        %923 = vmatmul.mubr.bf16.gmra.mrb[0].mxu0 %v626
        %v924 = vpop.f32.mrb[0].mxu0
        %v925 = vadd.f32 0.0, %v924
        %v926 = vpop.f32.mrb[0].mxu0
        %v927 = vadd.f32 0.0, %v926
        %v928 = vpop.f32.mrb[0].mxu0
        %v929 = vadd.f32 0.0, %v928
        %v930 = vpop.f32.mrb[0].mxu0
        %v931 = vadd.f32 0.0, %v930
        %932 = vmatprep.mubr.bf16.mxu0 %v629
        %933 = vmatmul.mubr.bf16.gmra.mrb[0].mxu0 %v628
        %v934 = vpop.f32.mrb[0].mxu0
        %v935 = vadd.f32 0.0, %v934
        %v936 = vpop.f32.mrb[0].mxu0
        %v937 = vadd.f32 0.0, %v936
        %v938 = vpop.f32.mrb[0].mxu0
        %v939 = vadd.f32 0.0, %v938
        %v940 = vpop.f32.mrb[0].mxu0
        %v941 = vadd.f32 0.0, %v940
        %942 = vmatprep.mubr.bf16.mxu0 %v631
        %943 = vmatmul.mubr.bf16.gmra.mrb[0].mxu0 %v630
        %v944 = vpop.f32.mrb[0].mxu0
        %v945 = vadd.f32 0.0, %v944
        %v946 = vpop.f32.mrb[0].mxu0
        %v947 = vadd.f32 0.0, %v946
        %v948 = vpop.f32.mrb[0].mxu0
        %v949 = vadd.f32 0.0, %v948
        %v950 = vpop.f32.mrb[0].mxu0
        %v951 = vadd.f32 0.0, %v950
        %952 = vmatprep.mubr.bf16.mxu0 %v633
        %953 = vmatmul.mubr.bf16.gmra.mrb[0].mxu0 %v632
        %v954 = vpop.f32.mrb[0].mxu0
        %v955 = vadd.f32 0.0, %v954
        %v956 = vpop.f32.mrb[0].mxu0
        %v957 = vadd.f32 0.0, %v956
        %v958 = vpop.f32.mrb[0].mxu0
        %v959 = vadd.f32 0.0, %v958
        %v960 = vpop.f32.mrb[0].mxu0
        %v961 = vadd.f32 0.0, %v960
        %962 = vmatprep.mubr.bf16.mxu0 %v635
        %963 = vmatmul.mubr.bf16.gmra.mrb[0].mxu0 %v634
        %v964 = vpop.f32.mrb[0].mxu0
        %v965 = vadd.f32 0.0, %v964
        %v966 = vpop.f32.mrb[0].mxu0
        %v967 = vadd.f32 0.0, %v966
        %v968 = vpop.f32.mrb[0].mxu0
        %v969 = vadd.f32 0.0, %v968
        %v970 = vpop.f32.mrb[0].mxu0
        %v971 = vadd.f32 0.0, %v970
        %972 = vmatprep.mubr.bf16.mxu0 %v637
        %973 = vmatmul.mubr.bf16.gmra.mrb[0].mxu0 %v636
        %v974 = vpop.f32.mrb[0].mxu0
        %v975 = vadd.f32 0.0, %v974
        %v976 = vpop.f32.mrb[0].mxu0
        %v977 = vadd.f32 0.0, %v976
        %v978 = vpop.f32.mrb[0].mxu0
        %v979 = vadd.f32 0.0, %v978
        %v980 = vpop.f32.mrb[0].mxu0
        %v981 = vadd.f32 0.0, %v980
        %982 = vmatprep.mubr.bf16.mxu0 %v639
        %983 = vmatmul.mubr.bf16.gmra.mrb[0].mxu0 %v638
        %v984 = vpop.f32.mrb[0].mxu0
        %v985 = vadd.f32 0.0, %v984
        %v986 = vpop.f32.mrb[0].mxu0
        %v987 = vadd.f32 0.0, %v986
        %v988 = vpop.f32.mrb[0].mxu0
        %v989 = vadd.f32 0.0, %v988
        %v990 = vpop.f32.mrb[0].mxu0
        %v991 = vadd.f32 0.0, %v990
        %992 = vmatprep.mubr.bf16.mxu0 %v641
        %993 = vmatmul.mubr.bf16.gmra.mrb[0].mxu0 %v640
        %v994 = vpop.f32.mrb[0].mxu0
        %v995 = vadd.f32 0.0, %v994
        %v996 = vpop.f32.mrb[0].mxu0
        %v997 = vadd.f32 0.0, %v996
        %v998 = vpop.f32.mrb[0].mxu0
        %v999 = vadd.f32 0.0, %v998
        %v1000 = vpop.f32.mrb[0].mxu0
        %v1001 = vadd.f32 0.0, %v1000
        %1002 = vmatprep.mubr.bf16.mxu0 %v643
        %1003 = vmatmul.mubr.bf16.gmra.mrb[0].mxu0 %v642
        %v1004 = vpop.f32.mrb[0].mxu0
        %v1005 = vadd.f32 0.0, %v1004
        %v1006 = vpop.f32.mrb[0].mxu0
        %v1007 = vadd.f32 0.0, %v1006
        %v1008 = vpop.f32.mrb[0].mxu0
        %v1009 = vadd.f32 0.0, %v1008
        %v1010 = vpop.f32.mrb[0].mxu0
        %v1011 = vadd.f32 0.0, %v1010
        %1012 = vmatprep.mubr.bf16.mxu0 %v645
        %1013 = vmatmul.mubr.bf16.gmra.mrb[0].mxu0 %v644
        %v1014 = vpop.f32.mrb[0].mxu0
        %v1015 = vadd.f32 0.0, %v1014
        %v1016 = vpop.f32.mrb[0].mxu0
        %v1017 = vadd.f32 0.0, %v1016
        %v1018 = vpop.f32.mrb[0].mxu0
        %v1019 = vadd.f32 0.0, %v1018
        %v1020 = vpop.f32.mrb[0].mxu0
        %v1021 = vadd.f32 0.0, %v1020
        %1022 = vmatprep.mubr.bf16.mxu0 %v647
        %1023 = vmatmul.mubr.bf16.gmra.mrb[0].mxu0 %v646
        %v1024 = vpop.f32.mrb[0].mxu0
        %v1025 = vadd.f32 0.0, %v1024
        %v1026 = vpop.f32.mrb[0].mxu0
        %v1027 = vadd.f32 0.0, %v1026
        %v1028 = vpop.f32.mrb[0].mxu0
        %v1029 = vadd.f32 0.0, %v1028
        %v1030 = vpop.f32.mrb[0].mxu0
        %v1031 = vadd.f32 0.0, %v1030
        %1032 = vdwg.mxu0
        %v1033 = vadd.f32 %v424, %v875
        %v1034 = vadd.f32 %v425, %v877
        %v1035 = vadd.f32 %v426, %v879
        %v1036 = vadd.f32 %v427, %v881
        %v1037 = vadd.f32 %v428, %v885
        %v1038 = vadd.f32 %v429, %v887
        %v1039 = vadd.f32 %v430, %v889
        %v1040 = vadd.f32 %v431, %v891
        %v1041 = vadd.f32 %v432, %v895
        %v1042 = vadd.f32 %v433, %v897
        %v1043 = vadd.f32 %v434, %v899
        %v1044 = vadd.f32 %v435, %v901
        %v1045 = vadd.f32 %v436, %v905
        %v1046 = vadd.f32 %v437, %v907
        %v1047 = vadd.f32 %v438, %v909
        %v1048 = vadd.f32 %v439, %v911
        %v1049 = vadd.f32 %v440, %v915
        %v1050 = vadd.f32 %v441, %v917
        %v1051 = vadd.f32 %v442, %v919
        %v1052 = vadd.f32 %v443, %v921
        %v1053 = vadd.f32 %v444, %v925
        %v1054 = vadd.f32 %v445, %v927
        %v1055 = vadd.f32 %v446, %v929
        %v1056 = vadd.f32 %v447, %v931
        %v1057 = vadd.f32 %v448, %v935
        %v1058 = vadd.f32 %v449, %v937
        %v1059 = vadd.f32 %v450, %v939
        %v1060 = vadd.f32 %v451, %v941
        %v1061 = vadd.f32 %v452, %v945
        %v1062 = vadd.f32 %v453, %v947
        %v1063 = vadd.f32 %v454, %v949
        %v1064 = vadd.f32 %v455, %v951
        %v1065 = vadd.f32 %v456, %v955
        %v1066 = vadd.f32 %v457, %v957
        %v1067 = vadd.f32 %v458, %v959
        %v1068 = vadd.f32 %v459, %v961
        %v1069 = vadd.f32 %v460, %v965
        %v1070 = vadd.f32 %v461, %v967
        %v1071 = vadd.f32 %v462, %v969
        %v1072 = vadd.f32 %v463, %v971
        %v1073 = vadd.f32 %v464, %v975
        %v1074 = vadd.f32 %v465, %v977
        %v1075 = vadd.f32 %v466, %v979
        %v1076 = vadd.f32 %v467, %v981
        %v1077 = vadd.f32 %v468, %v985
        %v1078 = vadd.f32 %v469, %v987
        %v1079 = vadd.f32 %v470, %v989
        %v1080 = vadd.f32 %v471, %v991
        %v1081 = vadd.f32 %v472, %v995
        %v1082 = vadd.f32 %v473, %v997
        %v1083 = vadd.f32 %v474, %v999
        %v1084 = vadd.f32 %v475, %v1001
        %v1085 = vadd.f32 %v476, %v1005
        %v1086 = vadd.f32 %v477, %v1007
        %v1087 = vadd.f32 %v478, %v1009
        %v1088 = vadd.f32 %v479, %v1011
        %v1089 = vadd.f32 %v480, %v1015
        %v1090 = vadd.f32 %v481, %v1017
        %v1091 = vadd.f32 %v482, %v1019
        %v1092 = vadd.f32 %v483, %v1021
        %v1093 = vadd.f32 %v484, %v1025
        %v1094 = vadd.f32 %v485, %v1027
        %v1095 = vadd.f32 %v486, %v1029
        %v1096 = vadd.f32 %v487, %v1031
        %1097 = vst [vmem:[%s305] sm:$0xff] %v1033
        %1098 = vst [vmem:[%s305 + $0x8] sm:$0xff] %v1034
        %1099 = vst [vmem:[%s305 + $0x10] sm:$0xff] %v1035
        %1100 = vst [vmem:[%s305 + $0x18] sm:$0xff] %v1036
        %1101 = vst [vmem:[%s305 + $0x20] sm:$0xff] %v1037
        %1102 = vst [vmem:[%s305 + $0x28] sm:$0xff] %v1038
        %1103 = vst [vmem:[%s305 + $0x30] sm:$0xff] %v1039
        %1104 = vst [vmem:[%s305 + $0x38] sm:$0xff] %v1040
        %1105 = vst [vmem:[%s305 + $0x40] sm:$0xff] %v1041
        %1106 = vst [vmem:[%s305 + $0x48] sm:$0xff] %v1042
        %1107 = vst [vmem:[%s305 + $0x50] sm:$0xff] %v1043
        %1108 = vst [vmem:[%s305 + $0x58] sm:$0xff] %v1044
        %1109 = vst [vmem:[%s305 + $0x60] sm:$0xff] %v1045
        %1110 = vst [vmem:[%s305 + $0x68] sm:$0xff] %v1046
        %1111 = vst [vmem:[%s305 + $0x70] sm:$0xff] %v1047
        %1112 = vst [vmem:[%s305 + $0x78] sm:$0xff] %v1048
        %1113 = vst [vmem:[%s305 + $0x80] sm:$0xff] %v1049
        %1114 = vst [vmem:[%s305 + $0x88] sm:$0xff] %v1050
        %1115 = vst [vmem:[%s305 + $0x90] sm:$0xff] %v1051
        %1116 = vst [vmem:[%s305 + $0x98] sm:$0xff] %v1052
        %1117 = vst [vmem:[%s305 + $0xa0] sm:$0xff] %v1053
        %1118 = vst [vmem:[%s305 + $0xa8] sm:$0xff] %v1054
        %1119 = vst [vmem:[%s305 + $0xb0] sm:$0xff] %v1055
        %1120 = vst [vmem:[%s305 + $0xb8] sm:$0xff] %v1056
        %1121 = vst [vmem:[%s305 + $0xc0] sm:$0xff] %v1057
        %1122 = vst [vmem:[%s305 + $0xc8] sm:$0xff] %v1058
        %1123 = vst [vmem:[%s305 + $0xd0] sm:$0xff] %v1059
        %1124 = vst [vmem:[%s305 + $0xd8] sm:$0xff] %v1060
        %1125 = vst [vmem:[%s305 + $0xe0] sm:$0xff] %v1061
        %1126 = vst [vmem:[%s305 + $0xe8] sm:$0xff] %v1062
        %1127 = vst [vmem:[%s305 + $0xf0] sm:$0xff] %v1063
        %1128 = vst [vmem:[%s305 + $0xf8] sm:$0xff] %v1064
        %1129 = vst [vmem:[%s305 + $0x100] sm:$0xff] %v1065
        %1130 = vst [vmem:[%s305 + $0x108] sm:$0xff] %v1066
        %1131 = vst [vmem:[%s305 + $0x110] sm:$0xff] %v1067
        %1132 = vst [vmem:[%s305 + $0x118] sm:$0xff] %v1068
        %1133 = vst [vmem:[%s305 + $0x120] sm:$0xff] %v1069
        %1134 = vst [vmem:[%s305 + $0x128] sm:$0xff] %v1070
        %1135 = vst [vmem:[%s305 + $0x130] sm:$0xff] %v1071
        %1136 = vst [vmem:[%s305 + $0x138] sm:$0xff] %v1072
        %1137 = vst [vmem:[%s305 + $0x140] sm:$0xff] %v1073
        %1138 = vst [vmem:[%s305 + $0x148] sm:$0xff] %v1074
        %1139 = vst [vmem:[%s305 + $0x150] sm:$0xff] %v1075
        %1140 = vst [vmem:[%s305 + $0x158] sm:$0xff] %v1076
        %1141 = vst [vmem:[%s305 + $0x160] sm:$0xff] %v1077
        %1142 = vst [vmem:[%s305 + $0x168] sm:$0xff] %v1078
        %1143 = vst [vmem:[%s305 + $0x170] sm:$0xff] %v1079
        %1144 = vst [vmem:[%s305 + $0x178] sm:$0xff] %v1080
        %1145 = vst [vmem:[%s305 + $0x180] sm:$0xff] %v1081
        %1146 = vst [vmem:[%s305 + $0x188] sm:$0xff] %v1082
        %1147 = vst [vmem:[%s305 + $0x190] sm:$0xff] %v1083
        %1148 = vst [vmem:[%s305 + $0x198] sm:$0xff] %v1084
        %1149 = vst [vmem:[%s305 + $0x1a0] sm:$0xff] %v1085
        %1150 = vst [vmem:[%s305 + $0x1a8] sm:$0xff] %v1086
        %1151 = vst [vmem:[%s305 + $0x1b0] sm:$0xff] %v1087
        %1152 = vst [vmem:[%s305 + $0x1b8] sm:$0xff] %v1088
        %1153 = vst [vmem:[%s305 + $0x1c0] sm:$0xff] %v1089
        %1154 = vst [vmem:[%s305 + $0x1c8] sm:$0xff] %v1090
        %1155 = vst [vmem:[%s305 + $0x1d0] sm:$0xff] %v1091
        %1156 = vst [vmem:[%s305 + $0x1d8] sm:$0xff] %v1092
        %1157 = vst [vmem:[%s305 + $0x1e0] sm:$0xff] %v1093
        %1158 = vst [vmem:[%s305 + $0x1e8] sm:$0xff] %v1094
        %1159 = vst [vmem:[%s305 + $0x1f0] sm:$0xff] %v1095
        %1160 = vst [vmem:[%s305 + $0x1f8] sm:$0xff] %v1096
        %p1161 = scmp.eq.s32.totalorder %s33, 2
        // Predicated region
        $region57: #{tpu_custom_call.1} parent=35 // pred_check
          %p1162 = pneg %p1161
        $region58: #{tpu_custom_call.1} parent=35 // pred_check_branch
          %1164 = sbr.rel (%p1162) target = $region60
        $region59: #{tpu_custom_call.1} parent=35 // pred_region
          %v1165 = vld [vmem:[%s305] sm:$0xff]
          %v1166 = vld [vmem:[%s305 + $0x8] sm:$0xff]
          %v1167 = vld [vmem:[%s305 + $0x10] sm:$0xff]
          %v1168 = vld [vmem:[%s305 + $0x18] sm:$0xff]
          %v1169 = vld [vmem:[%s305 + $0x20] sm:$0xff]
          %v1170 = vld [vmem:[%s305 + $0x28] sm:$0xff]
          %v1171 = vld [vmem:[%s305 + $0x30] sm:$0xff]
          %v1172 = vld [vmem:[%s305 + $0x38] sm:$0xff]
          %v1173 = vld [vmem:[%s305 + $0x40] sm:$0xff]
          %v1174 = vld [vmem:[%s305 + $0x48] sm:$0xff]
          %v1175 = vld [vmem:[%s305 + $0x50] sm:$0xff]
          %v1176 = vld [vmem:[%s305 + $0x58] sm:$0xff]
          %v1177 = vld [vmem:[%s305 + $0x60] sm:$0xff]
          %v1178 = vld [vmem:[%s305 + $0x68] sm:$0xff]
          %v1179 = vld [vmem:[%s305 + $0x70] sm:$0xff]
          %v1180 = vld [vmem:[%s305 + $0x78] sm:$0xff]
          %v1181 = vld [vmem:[%s305 + $0x80] sm:$0xff]
          %v1182 = vld [vmem:[%s305 + $0x88] sm:$0xff]
          %v1183 = vld [vmem:[%s305 + $0x90] sm:$0xff]
          %v1184 = vld [vmem:[%s305 + $0x98] sm:$0xff]
          %v1185 = vld [vmem:[%s305 + $0xa0] sm:$0xff]
          %v1186 = vld [vmem:[%s305 + $0xa8] sm:$0xff]
          %v1187 = vld [vmem:[%s305 + $0xb0] sm:$0xff]
          %v1188 = vld [vmem:[%s305 + $0xb8] sm:$0xff]
          %v1189 = vld [vmem:[%s305 + $0xc0] sm:$0xff]
          %v1190 = vld [vmem:[%s305 + $0xc8] sm:$0xff]
          %v1191 = vld [vmem:[%s305 + $0xd0] sm:$0xff]
          %v1192 = vld [vmem:[%s305 + $0xd8] sm:$0xff]
          %v1193 = vld [vmem:[%s305 + $0xe0] sm:$0xff]
          %v1194 = vld [vmem:[%s305 + $0xe8] sm:$0xff]
          %v1195 = vld [vmem:[%s305 + $0xf0] sm:$0xff]
          %v1196 = vld [vmem:[%s305 + $0xf8] sm:$0xff]
          %v1197 = vld [vmem:[%s305 + $0x100] sm:$0xff]
          %v1198 = vld [vmem:[%s305 + $0x108] sm:$0xff]
          %v1199 = vld [vmem:[%s305 + $0x110] sm:$0xff]
          %v1200 = vld [vmem:[%s305 + $0x118] sm:$0xff]
          %v1201 = vld [vmem:[%s305 + $0x120] sm:$0xff]
          %v1202 = vld [vmem:[%s305 + $0x128] sm:$0xff]
          %v1203 = vld [vmem:[%s305 + $0x130] sm:$0xff]
          %v1204 = vld [vmem:[%s305 + $0x138] sm:$0xff]
          %v1205 = vld [vmem:[%s305 + $0x140] sm:$0xff]
          %v1206 = vld [vmem:[%s305 + $0x148] sm:$0xff]
          %v1207 = vld [vmem:[%s305 + $0x150] sm:$0xff]
          %v1208 = vld [vmem:[%s305 + $0x158] sm:$0xff]
          %v1209 = vld [vmem:[%s305 + $0x160] sm:$0xff]
          %v1210 = vld [vmem:[%s305 + $0x168] sm:$0xff]
          %v1211 = vld [vmem:[%s305 + $0x170] sm:$0xff]
          %v1212 = vld [vmem:[%s305 + $0x178] sm:$0xff]
          %v1213 = vld [vmem:[%s305 + $0x180] sm:$0xff]
          %v1214 = vld [vmem:[%s305 + $0x188] sm:$0xff]
          %v1215 = vld [vmem:[%s305 + $0x190] sm:$0xff]
          %v1216 = vld [vmem:[%s305 + $0x198] sm:$0xff]
          %v1217 = vld [vmem:[%s305 + $0x1a0] sm:$0xff]
          %v1218 = vld [vmem:[%s305 + $0x1a8] sm:$0xff]
          %v1219 = vld [vmem:[%s305 + $0x1b0] sm:$0xff]
          %v1220 = vld [vmem:[%s305 + $0x1b8] sm:$0xff]
          %v1221 = vld [vmem:[%s305 + $0x1c0] sm:$0xff]
          %v1222 = vld [vmem:[%s305 + $0x1c8] sm:$0xff]
          %v1223 = vld [vmem:[%s305 + $0x1d0] sm:$0xff]
          %v1224 = vld [vmem:[%s305 + $0x1d8] sm:$0xff]
          %v1225 = vld [vmem:[%s305 + $0x1e0] sm:$0xff]
          %v1226 = vld [vmem:[%s305 + $0x1e8] sm:$0xff]
          %v1227 = vld [vmem:[%s305 + $0x1f0] sm:$0xff]
          %v1228 = vld [vmem:[%s305 + $0x1f8] sm:$0xff]
          %v1229 = vld [vmem:[#allocation7] sm:$0x3]
          %v1231 = vlaneseq
          %v1232 = vshrl.u32 %v1231, 7
          %v1233 = vsub.s32 0, %v1232
          %v1234 = vrot.slane %v1229, %v1233
          %v1235 = vlaneseq
          %v1236 = vshrl.u32 %v1235, 7
          %v1237 = vsub.s32 1, %v1236
          %v1238 = vrot.slane %v1229, %v1237
          %v1241 = vadd.f32 %v1165, %v1234
          %v1242 = vadd.f32 %v1166, %v1238
          %v1243 = vadd.f32 %v1167, %v1234
          %v1244 = vadd.f32 %v1168, %v1238
          %v1245 = vadd.f32 %v1169, %v1234
          %v1246 = vadd.f32 %v1170, %v1238
          %v1247 = vadd.f32 %v1171, %v1234
          %v1248 = vadd.f32 %v1172, %v1238
          %v1249 = vadd.f32 %v1173, %v1234
          %v1250 = vadd.f32 %v1174, %v1238
          %v1251 = vadd.f32 %v1175, %v1234
          %v1252 = vadd.f32 %v1176, %v1238
          %v1253 = vadd.f32 %v1177, %v1234
          %v1254 = vadd.f32 %v1178, %v1238
          %v1255 = vadd.f32 %v1179, %v1234
          %v1256 = vadd.f32 %v1180, %v1238
          %v1257 = vadd.f32 %v1181, %v1234
          %v1258 = vadd.f32 %v1182, %v1238
          %v1259 = vadd.f32 %v1183, %v1234
          %v1260 = vadd.f32 %v1184, %v1238
          %v1261 = vadd.f32 %v1185, %v1234
          %v1262 = vadd.f32 %v1186, %v1238
          %v1263 = vadd.f32 %v1187, %v1234
          %v1264 = vadd.f32 %v1188, %v1238
          %v1265 = vadd.f32 %v1189, %v1234
          %v1266 = vadd.f32 %v1190, %v1238
          %v1267 = vadd.f32 %v1191, %v1234
          %v1268 = vadd.f32 %v1192, %v1238
          %v1269 = vadd.f32 %v1193, %v1234
          %v1270 = vadd.f32 %v1194, %v1238
          %v1271 = vadd.f32 %v1195, %v1234
          %v1272 = vadd.f32 %v1196, %v1238
          %v1273 = vadd.f32 %v1197, %v1234
          %v1274 = vadd.f32 %v1198, %v1238
          %v1275 = vadd.f32 %v1199, %v1234
          %v1276 = vadd.f32 %v1200, %v1238
          %v1277 = vadd.f32 %v1201, %v1234
          %v1278 = vadd.f32 %v1202, %v1238
          %v1279 = vadd.f32 %v1203, %v1234
          %v1280 = vadd.f32 %v1204, %v1238
          %v1281 = vadd.f32 %v1205, %v1234
          %v1282 = vadd.f32 %v1206, %v1238
          %v1283 = vadd.f32 %v1207, %v1234
          %v1284 = vadd.f32 %v1208, %v1238
          %v1285 = vadd.f32 %v1209, %v1234
          %v1286 = vadd.f32 %v1210, %v1238
          %v1287 = vadd.f32 %v1211, %v1234
          %v1288 = vadd.f32 %v1212, %v1238
          %v1289 = vadd.f32 %v1213, %v1234
          %v1290 = vadd.f32 %v1214, %v1238
          %v1291 = vadd.f32 %v1215, %v1234
          %v1292 = vadd.f32 %v1216, %v1238
          %v1293 = vadd.f32 %v1217, %v1234
          %v1294 = vadd.f32 %v1218, %v1238
          %v1295 = vadd.f32 %v1219, %v1234
          %v1296 = vadd.f32 %v1220, %v1238
          %v1297 = vadd.f32 %v1221, %v1234
          %v1298 = vadd.f32 %v1222, %v1238
          %v1299 = vadd.f32 %v1223, %v1234
          %v1300 = vadd.f32 %v1224, %v1238
          %v1301 = vadd.f32 %v1225, %v1234
          %v1302 = vadd.f32 %v1226, %v1238
          %v1303 = vadd.f32 %v1227, %v1234
          %v1304 = vadd.f32 %v1228, %v1238
          %1305 = vst [vmem:[%s305] sm:$0xff] %v1241
          %1306 = vst [vmem:[%s305 + $0x8] sm:$0xff] %v1242
          %1307 = vst [vmem:[%s305 + $0x10] sm:$0xff] %v1243
          %1308 = vst [vmem:[%s305 + $0x18] sm:$0xff] %v1244
          %1309 = vst [vmem:[%s305 + $0x20] sm:$0xff] %v1245
          %1310 = vst [vmem:[%s305 + $0x28] sm:$0xff] %v1246
          %1311 = vst [vmem:[%s305 + $0x30] sm:$0xff] %v1247
          %1312 = vst [vmem:[%s305 + $0x38] sm:$0xff] %v1248
          %1313 = vst [vmem:[%s305 + $0x40] sm:$0xff] %v1249
          %1314 = vst [vmem:[%s305 + $0x48] sm:$0xff] %v1250
          %1315 = vst [vmem:[%s305 + $0x50] sm:$0xff] %v1251
          %1316 = vst [vmem:[%s305 + $0x58] sm:$0xff] %v1252
          %1317 = vst [vmem:[%s305 + $0x60] sm:$0xff] %v1253
          %1318 = vst [vmem:[%s305 + $0x68] sm:$0xff] %v1254
          %1319 = vst [vmem:[%s305 + $0x70] sm:$0xff] %v1255
          %1320 = vst [vmem:[%s305 + $0x78] sm:$0xff] %v1256
          %1321 = vst [vmem:[%s305 + $0x80] sm:$0xff] %v1257
          %1322 = vst [vmem:[%s305 + $0x88] sm:$0xff] %v1258
          %1323 = vst [vmem:[%s305 + $0x90] sm:$0xff] %v1259
          %1324 = vst [vmem:[%s305 + $0x98] sm:$0xff] %v1260
          %1325 = vst [vmem:[%s305 + $0xa0] sm:$0xff] %v1261
          %1326 = vst [vmem:[%s305 + $0xa8] sm:$0xff] %v1262
          %1327 = vst [vmem:[%s305 + $0xb0] sm:$0xff] %v1263
          %1328 = vst [vmem:[%s305 + $0xb8] sm:$0xff] %v1264
          %1329 = vst [vmem:[%s305 + $0xc0] sm:$0xff] %v1265
          %1330 = vst [vmem:[%s305 + $0xc8] sm:$0xff] %v1266
          %1331 = vst [vmem:[%s305 + $0xd0] sm:$0xff] %v1267
          %1332 = vst [vmem:[%s305 + $0xd8] sm:$0xff] %v1268
          %1333 = vst [vmem:[%s305 + $0xe0] sm:$0xff] %v1269
          %1334 = vst [vmem:[%s305 + $0xe8] sm:$0xff] %v1270
          %1335 = vst [vmem:[%s305 + $0xf0] sm:$0xff] %v1271
          %1336 = vst [vmem:[%s305 + $0xf8] sm:$0xff] %v1272
          %1337 = vst [vmem:[%s305 + $0x100] sm:$0xff] %v1273
          %1338 = vst [vmem:[%s305 + $0x108] sm:$0xff] %v1274
          %1339 = vst [vmem:[%s305 + $0x110] sm:$0xff] %v1275
          %1340 = vst [vmem:[%s305 + $0x118] sm:$0xff] %v1276
          %1341 = vst [vmem:[%s305 + $0x120] sm:$0xff] %v1277
          %1342 = vst [vmem:[%s305 + $0x128] sm:$0xff] %v1278
          %1343 = vst [vmem:[%s305 + $0x130] sm:$0xff] %v1279
          %1344 = vst [vmem:[%s305 + $0x138] sm:$0xff] %v1280
          %1345 = vst [vmem:[%s305 + $0x140] sm:$0xff] %v1281
          %1346 = vst [vmem:[%s305 + $0x148] sm:$0xff] %v1282
          %1347 = vst [vmem:[%s305 + $0x150] sm:$0xff] %v1283
          %1348 = vst [vmem:[%s305 + $0x158] sm:$0xff] %v1284
          %1349 = vst [vmem:[%s305 + $0x160] sm:$0xff] %v1285
          %1350 = vst [vmem:[%s305 + $0x168] sm:$0xff] %v1286
          %1351 = vst [vmem:[%s305 + $0x170] sm:$0xff] %v1287
          %1352 = vst [vmem:[%s305 + $0x178] sm:$0xff] %v1288
          %1353 = vst [vmem:[%s305 + $0x180] sm:$0xff] %v1289
          %1354 = vst [vmem:[%s305 + $0x188] sm:$0xff] %v1290
          %1355 = vst [vmem:[%s305 + $0x190] sm:$0xff] %v1291
          %1356 = vst [vmem:[%s305 + $0x198] sm:$0xff] %v1292
          %1357 = vst [vmem:[%s305 + $0x1a0] sm:$0xff] %v1293
          %1358 = vst [vmem:[%s305 + $0x1a8] sm:$0xff] %v1294
          %1359 = vst [vmem:[%s305 + $0x1b0] sm:$0xff] %v1295
          %1360 = vst [vmem:[%s305 + $0x1b8] sm:$0xff] %v1296
          %1361 = vst [vmem:[%s305 + $0x1c0] sm:$0xff] %v1297
          %1362 = vst [vmem:[%s305 + $0x1c8] sm:$0xff] %v1298
          %1363 = vst [vmem:[%s305 + $0x1d0] sm:$0xff] %v1299
          %1364 = vst [vmem:[%s305 + $0x1d8] sm:$0xff] %v1300
          %1365 = vst [vmem:[%s305 + $0x1e0] sm:$0xff] %v1301
          %1366 = vst [vmem:[%s305 + $0x1e8] sm:$0xff] %v1302
          %1367 = vst [vmem:[%s305 + $0x1f0] sm:$0xff] %v1303
          %1368 = vst [vmem:[%s305 + $0x1f8] sm:$0xff] %v1304
          %v1369 = vmax.f32 %v1241, 0.0
          %v1370 = vmax.f32 %v1242, 0.0
          %v1371 = vmax.f32 %v1243, 0.0
          %v1372 = vmax.f32 %v1244, 0.0
          %v1373 = vmax.f32 %v1245, 0.0
          %v1374 = vmax.f32 %v1246, 0.0
          %v1375 = vmax.f32 %v1247, 0.0
          %v1376 = vmax.f32 %v1248, 0.0
          %v1377 = vmax.f32 %v1249, 0.0
          %v1378 = vmax.f32 %v1250, 0.0
          %v1379 = vmax.f32 %v1251, 0.0
          %v1380 = vmax.f32 %v1252, 0.0
          %v1381 = vmax.f32 %v1253, 0.0
          %v1382 = vmax.f32 %v1254, 0.0
          %v1383 = vmax.f32 %v1255, 0.0
          %v1384 = vmax.f32 %v1256, 0.0
          %v1385 = vmax.f32 %v1257, 0.0
          %v1386 = vmax.f32 %v1258, 0.0
          %v1387 = vmax.f32 %v1259, 0.0
          %v1388 = vmax.f32 %v1260, 0.0
          %v1389 = vmax.f32 %v1261, 0.0
          %v1390 = vmax.f32 %v1262, 0.0
          %v1391 = vmax.f32 %v1263, 0.0
          %v1392 = vmax.f32 %v1264, 0.0
          %v1393 = vmax.f32 %v1265, 0.0
          %v1394 = vmax.f32 %v1266, 0.0
          %v1395 = vmax.f32 %v1267, 0.0
          %v1396 = vmax.f32 %v1268, 0.0
          %v1397 = vmax.f32 %v1269, 0.0
          %v1398 = vmax.f32 %v1270, 0.0
          %v1399 = vmax.f32 %v1271, 0.0
          %v1400 = vmax.f32 %v1272, 0.0
          %v1401 = vmax.f32 %v1273, 0.0
          %v1402 = vmax.f32 %v1274, 0.0
          %v1403 = vmax.f32 %v1275, 0.0
          %v1404 = vmax.f32 %v1276, 0.0
          %v1405 = vmax.f32 %v1277, 0.0
          %v1406 = vmax.f32 %v1278, 0.0
          %v1407 = vmax.f32 %v1279, 0.0
          %v1408 = vmax.f32 %v1280, 0.0
          %v1409 = vmax.f32 %v1281, 0.0
          %v1410 = vmax.f32 %v1282, 0.0
          %v1411 = vmax.f32 %v1283, 0.0
          %v1412 = vmax.f32 %v1284, 0.0
          %v1413 = vmax.f32 %v1285, 0.0
          %v1414 = vmax.f32 %v1286, 0.0
          %v1415 = vmax.f32 %v1287, 0.0
          %v1416 = vmax.f32 %v1288, 0.0
          %v1417 = vmax.f32 %v1289, 0.0
          %v1418 = vmax.f32 %v1290, 0.0
          %v1419 = vmax.f32 %v1291, 0.0
          %v1420 = vmax.f32 %v1292, 0.0
          %v1421 = vmax.f32 %v1293, 0.0
          %v1422 = vmax.f32 %v1294, 0.0
          %v1423 = vmax.f32 %v1295, 0.0
          %v1424 = vmax.f32 %v1296, 0.0
          %v1425 = vmax.f32 %v1297, 0.0
          %v1426 = vmax.f32 %v1298, 0.0
          %v1427 = vmax.f32 %v1299, 0.0
          %v1428 = vmax.f32 %v1300, 0.0
          %v1429 = vmax.f32 %v1301, 0.0
          %v1430 = vmax.f32 %v1302, 0.0
          %v1431 = vmax.f32 %v1303, 0.0
          %v1432 = vmax.f32 %v1304, 0.0
          %v1433 = vpack.c.bf16 %v1371, %v1369
          %v1434 = vpack.c.bf16 %v1372, %v1370
          %v1435 = vpack.c.bf16 %v1375, %v1373
          %v1436 = vpack.c.bf16 %v1376, %v1374
          %v1437 = vpack.c.bf16 %v1379, %v1377
          %v1438 = vpack.c.bf16 %v1380, %v1378
          %v1439 = vpack.c.bf16 %v1383, %v1381
          %v1440 = vpack.c.bf16 %v1384, %v1382
          %v1441 = vpack.c.bf16 %v1387, %v1385
          %v1442 = vpack.c.bf16 %v1388, %v1386
          %v1443 = vpack.c.bf16 %v1391, %v1389
          %v1444 = vpack.c.bf16 %v1392, %v1390
          %v1445 = vpack.c.bf16 %v1395, %v1393
          %v1446 = vpack.c.bf16 %v1396, %v1394
          %v1447 = vpack.c.bf16 %v1399, %v1397
          %v1448 = vpack.c.bf16 %v1400, %v1398
          %v1449 = vpack.c.bf16 %v1403, %v1401
          %v1450 = vpack.c.bf16 %v1404, %v1402
          %v1451 = vpack.c.bf16 %v1407, %v1405
          %v1452 = vpack.c.bf16 %v1408, %v1406
          %v1453 = vpack.c.bf16 %v1411, %v1409
          %v1454 = vpack.c.bf16 %v1412, %v1410
          %v1455 = vpack.c.bf16 %v1415, %v1413
          %v1456 = vpack.c.bf16 %v1416, %v1414
          %v1457 = vpack.c.bf16 %v1419, %v1417
          %v1458 = vpack.c.bf16 %v1420, %v1418
          %v1459 = vpack.c.bf16 %v1423, %v1421
          %v1460 = vpack.c.bf16 %v1424, %v1422
          %v1461 = vpack.c.bf16 %v1427, %v1425
          %v1462 = vpack.c.bf16 %v1428, %v1426
          %v1463 = vpack.c.bf16 %v1431, %v1429
          %v1464 = vpack.c.bf16 %v1432, %v1430
          %v1465 = vld [vmem:[#allocation8] sm:$0xf]
          %v1466 = vld [vmem:[#allocation8 + $0x4] sm:$0xf]
          %v1467 = vld [vmem:[#allocation8 + $0x8] sm:$0xf]
          %v1468 = vld [vmem:[#allocation8 + $0xc] sm:$0xf]
          %v1469 = vld [vmem:[#allocation8 + $0x10] sm:$0xf]
          %v1470 = vld [vmem:[#allocation8 + $0x14] sm:$0xf]
          %v1471 = vld [vmem:[#allocation8 + $0x18] sm:$0xf]
          %v1472 = vld [vmem:[#allocation8 + $0x1c] sm:$0xf]
          %v1473 = vld [vmem:[#allocation8 + $0x20] sm:$0xf]
          %v1474 = vld [vmem:[#allocation8 + $0x24] sm:$0xf]
          %v1475 = vld [vmem:[#allocation8 + $0x28] sm:$0xf]
          %v1476 = vld [vmem:[#allocation8 + $0x2c] sm:$0xf]
          %v1477 = vld [vmem:[#allocation8 + $0x30] sm:$0xf]
          %v1478 = vld [vmem:[#allocation8 + $0x34] sm:$0xf]
          %v1479 = vld [vmem:[#allocation8 + $0x38] sm:$0xf]
          %v1480 = vld [vmem:[#allocation8 + $0x3c] sm:$0xf]
          %v1481 = vld [vmem:[#allocation8 + $0x40] sm:$0xf]
          %v1482 = vld [vmem:[#allocation8 + $0x44] sm:$0xf]
          %v1483 = vld [vmem:[#allocation8 + $0x48] sm:$0xf]
          %v1484 = vld [vmem:[#allocation8 + $0x4c] sm:$0xf]
          %v1485 = vld [vmem:[#allocation8 + $0x50] sm:$0xf]
          %v1486 = vld [vmem:[#allocation8 + $0x54] sm:$0xf]
          %v1487 = vld [vmem:[#allocation8 + $0x58] sm:$0xf]
          %v1488 = vld [vmem:[#allocation8 + $0x5c] sm:$0xf]
          %v1489 = vld [vmem:[#allocation8 + $0x60] sm:$0xf]
          %v1490 = vld [vmem:[#allocation8 + $0x64] sm:$0xf]
          %v1491 = vld [vmem:[#allocation8 + $0x68] sm:$0xf]
          %v1492 = vld [vmem:[#allocation8 + $0x6c] sm:$0xf]
          %v1493 = vld [vmem:[#allocation8 + $0x70] sm:$0xf]
          %v1494 = vld [vmem:[#allocation8 + $0x74] sm:$0xf]
          %v1495 = vld [vmem:[#allocation8 + $0x78] sm:$0xf]
          %v1496 = vld [vmem:[#allocation8 + $0x7c] sm:$0xf]
          %v1529 = vunpack.c.l.b16 %v1465
          %v1530 = vunpack.c.l.b16 %v1466
          %v1531 = vunpack.c.l.b16 %v1467
          %v1532 = vunpack.c.l.b16 %v1468
          %v1533 = vunpack.c.l.b16 %v1469
          %v1534 = vunpack.c.l.b16 %v1470
          %v1535 = vunpack.c.l.b16 %v1471
          %v1536 = vunpack.c.l.b16 %v1472
          %v1537 = vunpack.c.l.b16 %v1473
          %v1538 = vunpack.c.l.b16 %v1474
          %v1539 = vunpack.c.l.b16 %v1475
          %v1540 = vunpack.c.l.b16 %v1476
          %v1541 = vunpack.c.l.b16 %v1477
          %v1542 = vunpack.c.l.b16 %v1478
          %v1543 = vunpack.c.l.b16 %v1479
          %v1544 = vunpack.c.l.b16 %v1480
          %v1545 = vunpack.c.l.b16 %v1481
          %v1546 = vunpack.c.l.b16 %v1482
          %v1547 = vunpack.c.l.b16 %v1483
          %v1548 = vunpack.c.l.b16 %v1484
          %v1549 = vunpack.c.l.b16 %v1485
          %v1550 = vunpack.c.l.b16 %v1486
          %v1551 = vunpack.c.l.b16 %v1487
          %v1552 = vunpack.c.l.b16 %v1488
          %v1553 = vunpack.c.l.b16 %v1489
          %v1554 = vunpack.c.l.b16 %v1490
          %v1555 = vunpack.c.l.b16 %v1491
          %v1556 = vunpack.c.l.b16 %v1492
          %v1557 = vunpack.c.l.b16 %v1493
          %v1558 = vunpack.c.l.b16 %v1494
          %v1559 = vunpack.c.l.b16 %v1495
          %v1560 = vunpack.c.l.b16 %v1496
          %v1561 = vpack.c.b16 %v1530, %v1529
          %v1562 = vpack.c.b16 %v1532, %v1531
          %v1563 = vpack.c.b16 %v1534, %v1533
          %v1564 = vpack.c.b16 %v1536, %v1535
          %v1565 = vpack.c.b16 %v1538, %v1537
          %v1566 = vpack.c.b16 %v1540, %v1539
          %v1567 = vpack.c.b16 %v1542, %v1541
          %v1568 = vpack.c.b16 %v1544, %v1543
          %v1569 = vpack.c.b16 %v1546, %v1545
          %v1570 = vpack.c.b16 %v1548, %v1547
          %v1571 = vpack.c.b16 %v1550, %v1549
          %v1572 = vpack.c.b16 %v1552, %v1551
          %v1573 = vpack.c.b16 %v1554, %v1553
          %v1574 = vpack.c.b16 %v1556, %v1555
          %v1575 = vpack.c.b16 %v1558, %v1557
          %v1576 = vpack.c.b16 %v1560, %v1559
          %1593 = vmatprep.subr.bf16.mxu0 0
          %1594 = vmatpush1.bf16.msra.mxu0 %v1561
          %1595 = vmatprep.subr.bf16.mxu0 0
          %1596 = vmatpush1.bf16.msra.mxu0 %v1562
          %1597 = vmatprep.subr.bf16.mxu0 0
          %1598 = vmatpush1.bf16.msra.mxu0 %v1563
          %1599 = vmatprep.subr.bf16.mxu0 0
          %1600 = vmatpush1.bf16.msra.mxu0 %v1564
          %1601 = vmatprep.subr.bf16.mxu0 0
          %1602 = vmatpush1.bf16.msra.mxu0 %v1565
          %1603 = vmatprep.subr.bf16.mxu0 0
          %1604 = vmatpush1.bf16.msra.mxu0 %v1566
          %1605 = vmatprep.subr.bf16.mxu0 0
          %1606 = vmatpush1.bf16.msra.mxu0 %v1567
          %1607 = vmatprep.subr.bf16.mxu0 0
          %1608 = vmatpush1.bf16.msra.mxu0 %v1568
          %1609 = vmatprep.subr.bf16.mxu0 0
          %1610 = vmatpush1.bf16.msra.mxu0 %v1569
          %1611 = vmatprep.subr.bf16.mxu0 0
          %1612 = vmatpush1.bf16.msra.mxu0 %v1570
          %1613 = vmatprep.subr.bf16.mxu0 0
          %1614 = vmatpush1.bf16.msra.mxu0 %v1571
          %1615 = vmatprep.subr.bf16.mxu0 0
          %1616 = vmatpush1.bf16.msra.mxu0 %v1572
          %1617 = vmatprep.subr.bf16.mxu0 0
          %1618 = vmatpush1.bf16.msra.mxu0 %v1573
          %1619 = vmatprep.subr.bf16.mxu0 0
          %1620 = vmatpush1.bf16.msra.mxu0 %v1574
          %1621 = vmatprep.subr.bf16.mxu0 0
          %1622 = vmatpush1.bf16.msra.mxu0 %v1575
          %1623 = vmatprep.subr.bf16.mxu0 0
          %1624 = vmatpush1.bf16.msra.mxu0 %v1576
          %1625 = vmatprep.mubr.bf16.mxu0 %v1434
          %1626 = vmatmul.mubr.bf16.gmra.mrb[0].mxu0 %v1433
          %v1627 = vpop.f32.mrb[0].mxu0
          %v1628 = vadd.f32 0.0, %v1627
          %v1629 = vpop.f32.mrb[0].mxu0
          %v1630 = vpop.f32.mrb[0].mxu0
          %v1631 = vadd.f32 0.0, %v1630
          %v1632 = vpop.f32.mrb[0].mxu0
          %1633 = vmatprep.mubr.bf16.mxu0 %v1436
          %1634 = vmatmul.mubr.bf16.gmra.mrb[0].mxu0 %v1435
          %v1635 = vpop.f32.mrb[0].mxu0
          %v1636 = vadd.f32 0.0, %v1635
          %v1637 = vpop.f32.mrb[0].mxu0
          %v1638 = vpop.f32.mrb[0].mxu0
          %v1639 = vadd.f32 0.0, %v1638
          %v1640 = vpop.f32.mrb[0].mxu0
          %1641 = vmatprep.mubr.bf16.mxu0 %v1438
          %1642 = vmatmul.mubr.bf16.gmra.mrb[0].mxu0 %v1437
          %v1643 = vpop.f32.mrb[0].mxu0
          %v1644 = vadd.f32 0.0, %v1643
          %v1645 = vpop.f32.mrb[0].mxu0
          %v1646 = vpop.f32.mrb[0].mxu0
          %v1647 = vadd.f32 0.0, %v1646
          %v1648 = vpop.f32.mrb[0].mxu0
          %1649 = vmatprep.mubr.bf16.mxu0 %v1440
          %1650 = vmatmul.mubr.bf16.gmra.mrb[0].mxu0 %v1439
          %v1651 = vpop.f32.mrb[0].mxu0
          %v1652 = vadd.f32 0.0, %v1651
          %v1653 = vpop.f32.mrb[0].mxu0
          %v1654 = vpop.f32.mrb[0].mxu0
          %v1655 = vadd.f32 0.0, %v1654
          %v1656 = vpop.f32.mrb[0].mxu0
          %1657 = vmatprep.mubr.bf16.mxu0 %v1442
          %1658 = vmatmul.mubr.bf16.gmra.mrb[0].mxu0 %v1441
          %v1659 = vpop.f32.mrb[0].mxu0
          %v1660 = vadd.f32 0.0, %v1659
          %v1661 = vpop.f32.mrb[0].mxu0
          %v1662 = vpop.f32.mrb[0].mxu0
          %v1663 = vadd.f32 0.0, %v1662
          %v1664 = vpop.f32.mrb[0].mxu0
          %1665 = vmatprep.mubr.bf16.mxu0 %v1444
          %1666 = vmatmul.mubr.bf16.gmra.mrb[0].mxu0 %v1443
          %v1667 = vpop.f32.mrb[0].mxu0
          %v1668 = vadd.f32 0.0, %v1667
          %v1669 = vpop.f32.mrb[0].mxu0
          %v1670 = vpop.f32.mrb[0].mxu0
          %v1671 = vadd.f32 0.0, %v1670
          %v1672 = vpop.f32.mrb[0].mxu0
          %1673 = vmatprep.mubr.bf16.mxu0 %v1446
          %1674 = vmatmul.mubr.bf16.gmra.mrb[0].mxu0 %v1445
          %v1675 = vpop.f32.mrb[0].mxu0
          %v1676 = vadd.f32 0.0, %v1675
          %v1677 = vpop.f32.mrb[0].mxu0
          %v1678 = vpop.f32.mrb[0].mxu0
          %v1679 = vadd.f32 0.0, %v1678
          %v1680 = vpop.f32.mrb[0].mxu0
          %1681 = vmatprep.mubr.bf16.mxu0 %v1448
          %1682 = vmatmul.mubr.bf16.gmra.mrb[0].mxu0 %v1447
          %v1683 = vpop.f32.mrb[0].mxu0
          %v1684 = vadd.f32 0.0, %v1683
          %v1685 = vpop.f32.mrb[0].mxu0
          %v1686 = vpop.f32.mrb[0].mxu0
          %v1687 = vadd.f32 0.0, %v1686
          %v1688 = vpop.f32.mrb[0].mxu0
          %1689 = vmatprep.mubr.bf16.mxu0 %v1450
          %1690 = vmatmul.mubr.bf16.gmra.mrb[0].mxu0 %v1449
          %v1691 = vpop.f32.mrb[0].mxu0
          %v1692 = vadd.f32 0.0, %v1691
          %v1693 = vpop.f32.mrb[0].mxu0
          %v1694 = vpop.f32.mrb[0].mxu0
          %v1695 = vadd.f32 0.0, %v1694
          %v1696 = vpop.f32.mrb[0].mxu0
          %1697 = vmatprep.mubr.bf16.mxu0 %v1452
          %1698 = vmatmul.mubr.bf16.gmra.mrb[0].mxu0 %v1451
          %v1699 = vpop.f32.mrb[0].mxu0
          %v1700 = vadd.f32 0.0, %v1699
          %v1701 = vpop.f32.mrb[0].mxu0
          %v1702 = vpop.f32.mrb[0].mxu0
          %v1703 = vadd.f32 0.0, %v1702
          %v1704 = vpop.f32.mrb[0].mxu0
          %1705 = vmatprep.mubr.bf16.mxu0 %v1454
          %1706 = vmatmul.mubr.bf16.gmra.mrb[0].mxu0 %v1453
          %v1707 = vpop.f32.mrb[0].mxu0
          %v1708 = vadd.f32 0.0, %v1707
          %v1709 = vpop.f32.mrb[0].mxu0
          %v1710 = vpop.f32.mrb[0].mxu0
          %v1711 = vadd.f32 0.0, %v1710
          %v1712 = vpop.f32.mrb[0].mxu0
          %1713 = vmatprep.mubr.bf16.mxu0 %v1456
          %1714 = vmatmul.mubr.bf16.gmra.mrb[0].mxu0 %v1455
          %v1715 = vpop.f32.mrb[0].mxu0
          %v1716 = vadd.f32 0.0, %v1715
          %v1717 = vpop.f32.mrb[0].mxu0
          %v1718 = vpop.f32.mrb[0].mxu0
          %v1719 = vadd.f32 0.0, %v1718
          %v1720 = vpop.f32.mrb[0].mxu0
          %1721 = vmatprep.mubr.bf16.mxu0 %v1458
          %1722 = vmatmul.mubr.bf16.gmra.mrb[0].mxu0 %v1457
          %v1723 = vpop.f32.mrb[0].mxu0
          %v1724 = vadd.f32 0.0, %v1723
          %v1725 = vpop.f32.mrb[0].mxu0
          %v1726 = vpop.f32.mrb[0].mxu0
          %v1727 = vadd.f32 0.0, %v1726
          %v1728 = vpop.f32.mrb[0].mxu0
          %1729 = vmatprep.mubr.bf16.mxu0 %v1460
          %1730 = vmatmul.mubr.bf16.gmra.mrb[0].mxu0 %v1459
          %v1731 = vpop.f32.mrb[0].mxu0
          %v1732 = vadd.f32 0.0, %v1731
          %v1733 = vpop.f32.mrb[0].mxu0
          %v1734 = vpop.f32.mrb[0].mxu0
          %v1735 = vadd.f32 0.0, %v1734
          %v1736 = vpop.f32.mrb[0].mxu0
          %1737 = vmatprep.mubr.bf16.mxu0 %v1462
          %1738 = vmatmul.mubr.bf16.gmra.mrb[0].mxu0 %v1461
          %v1739 = vpop.f32.mrb[0].mxu0
          %v1740 = vadd.f32 0.0, %v1739
          %v1741 = vpop.f32.mrb[0].mxu0
          %v1742 = vpop.f32.mrb[0].mxu0
          %v1743 = vadd.f32 0.0, %v1742
          %v1744 = vpop.f32.mrb[0].mxu0
          %1745 = vmatprep.mubr.bf16.mxu0 %v1464
          %1746 = vmatmul.mubr.bf16.gmra.mrb[0].mxu0 %v1463
          %v1747 = vpop.f32.mrb[0].mxu0
          %v1748 = vadd.f32 0.0, %v1747
          %v1749 = vpop.f32.mrb[0].mxu0
          %v1750 = vpop.f32.mrb[0].mxu0
          %v1751 = vadd.f32 0.0, %v1750
          %v1752 = vpop.f32.mrb[0].mxu0
          %1753 = vdwg.mxu0
          %v1754 = vpack.c.bf16 %v1631, %v1628
          %v1755 = vpack.c.bf16 %v1639, %v1636
          %v1756 = vpack.c.bf16 %v1647, %v1644
          %v1757 = vpack.c.bf16 %v1655, %v1652
          %v1758 = vpack.c.bf16 %v1663, %v1660
          %v1759 = vpack.c.bf16 %v1671, %v1668
          %v1760 = vpack.c.bf16 %v1679, %v1676
          %v1761 = vpack.c.bf16 %v1687, %v1684
          %v1762 = vpack.c.bf16 %v1695, %v1692
          %v1763 = vpack.c.bf16 %v1703, %v1700
          %v1764 = vpack.c.bf16 %v1711, %v1708
          %v1765 = vpack.c.bf16 %v1719, %v1716
          %v1766 = vpack.c.bf16 %v1727, %v1724
          %v1767 = vpack.c.bf16 %v1735, %v1732
          %v1768 = vpack.c.bf16 %v1743, %v1740
          %v1769 = vpack.c.bf16 %v1751, %v1748
          %v1786 = vunpack.c.l.b16 %v1754
          %v1787 = vunpack.c.h.b16 %v1754
          %v1788 = vunpack.c.l.b16 %v1755
          %v1789 = vunpack.c.h.b16 %v1755
          %v1790 = vunpack.c.l.b16 %v1756
          %v1791 = vunpack.c.h.b16 %v1756
          %v1792 = vunpack.c.l.b16 %v1757
          %v1793 = vunpack.c.h.b16 %v1757
          %v1794 = vunpack.c.l.b16 %v1758
          %v1795 = vunpack.c.h.b16 %v1758
          %v1796 = vunpack.c.l.b16 %v1759
          %v1797 = vunpack.c.h.b16 %v1759
          %v1798 = vunpack.c.l.b16 %v1760
          %v1799 = vunpack.c.h.b16 %v1760
          %v1800 = vunpack.c.l.b16 %v1761
          %v1801 = vunpack.c.h.b16 %v1761
          %v1802 = vunpack.c.l.b16 %v1762
          %v1803 = vunpack.c.h.b16 %v1762
          %v1804 = vunpack.c.l.b16 %v1763
          %v1805 = vunpack.c.h.b16 %v1763
          %v1806 = vunpack.c.l.b16 %v1764
          %v1807 = vunpack.c.h.b16 %v1764
          %v1808 = vunpack.c.l.b16 %v1765
          %v1809 = vunpack.c.h.b16 %v1765
          %v1810 = vunpack.c.l.b16 %v1766
          %v1811 = vunpack.c.h.b16 %v1766
          %v1812 = vunpack.c.l.b16 %v1767
          %v1813 = vunpack.c.h.b16 %v1767
          %v1814 = vunpack.c.l.b16 %v1768
          %v1815 = vunpack.c.h.b16 %v1768
          %v1816 = vunpack.c.l.b16 %v1769
          %v1817 = vunpack.c.h.b16 %v1769
          %v1818 = vpack.c.b16 %v1786, %v1786
          %v1819 = vpack.c.b16 %v1787, %v1787
          %v1820 = vpack.c.b16 %v1788, %v1788
          %v1821 = vpack.c.b16 %v1789, %v1789
          %v1822 = vpack.c.b16 %v1790, %v1790
          %v1823 = vpack.c.b16 %v1791, %v1791
          %v1824 = vpack.c.b16 %v1792, %v1792
          %v1825 = vpack.c.b16 %v1793, %v1793
          %v1826 = vpack.c.b16 %v1794, %v1794
          %v1827 = vpack.c.b16 %v1795, %v1795
          %v1828 = vpack.c.b16 %v1796, %v1796
          %v1829 = vpack.c.b16 %v1797, %v1797
          %v1830 = vpack.c.b16 %v1798, %v1798
          %v1831 = vpack.c.b16 %v1799, %v1799
          %v1832 = vpack.c.b16 %v1800, %v1800
          %v1833 = vpack.c.b16 %v1801, %v1801
          %v1834 = vpack.c.b16 %v1802, %v1802
          %v1835 = vpack.c.b16 %v1803, %v1803
          %v1836 = vpack.c.b16 %v1804, %v1804
          %v1837 = vpack.c.b16 %v1805, %v1805
          %v1838 = vpack.c.b16 %v1806, %v1806
          %v1839 = vpack.c.b16 %v1807, %v1807
          %v1840 = vpack.c.b16 %v1808, %v1808
          %v1841 = vpack.c.b16 %v1809, %v1809
          %v1842 = vpack.c.b16 %v1810, %v1810
          %v1843 = vpack.c.b16 %v1811, %v1811
          %v1844 = vpack.c.b16 %v1812, %v1812
          %v1845 = vpack.c.b16 %v1813, %v1813
          %v1846 = vpack.c.b16 %v1814, %v1814
          %v1847 = vpack.c.b16 %v1815, %v1815
          %v1848 = vpack.c.b16 %v1816, %v1816
          %v1849 = vpack.c.b16 %v1817, %v1817
          %1882 = vst [vmem:[%s312] sm:$0xf] %v1818
          %1883 = vst [vmem:[%s312 + $0x4] sm:$0xf] %v1819
          %1884 = vst [vmem:[%s312 + $0x8] sm:$0xf] %v1820
          %1885 = vst [vmem:[%s312 + $0xc] sm:$0xf] %v1821
          %1886 = vst [vmem:[%s312 + $0x10] sm:$0xf] %v1822
          %1887 = vst [vmem:[%s312 + $0x14] sm:$0xf] %v1823
          %1888 = vst [vmem:[%s312 + $0x18] sm:$0xf] %v1824
          %1889 = vst [vmem:[%s312 + $0x1c] sm:$0xf] %v1825
          %1890 = vst [vmem:[%s312 + $0x20] sm:$0xf] %v1826
          %1891 = vst [vmem:[%s312 + $0x24] sm:$0xf] %v1827
          %1892 = vst [vmem:[%s312 + $0x28] sm:$0xf] %v1828
          %1893 = vst [vmem:[%s312 + $0x2c] sm:$0xf] %v1829
          %1894 = vst [vmem:[%s312 + $0x30] sm:$0xf] %v1830
          %1895 = vst [vmem:[%s312 + $0x34] sm:$0xf] %v1831
          %1896 = vst [vmem:[%s312 + $0x38] sm:$0xf] %v1832
          %1897 = vst [vmem:[%s312 + $0x3c] sm:$0xf] %v1833
          %1898 = vst [vmem:[%s312 + $0x40] sm:$0xf] %v1834
          %1899 = vst [vmem:[%s312 + $0x44] sm:$0xf] %v1835
          %1900 = vst [vmem:[%s312 + $0x48] sm:$0xf] %v1836
          %1901 = vst [vmem:[%s312 + $0x4c] sm:$0xf] %v1837
          %1902 = vst [vmem:[%s312 + $0x50] sm:$0xf] %v1838
          %1903 = vst [vmem:[%s312 + $0x54] sm:$0xf] %v1839
          %1904 = vst [vmem:[%s312 + $0x58] sm:$0xf] %v1840
          %1905 = vst [vmem:[%s312 + $0x5c] sm:$0xf] %v1841
          %1906 = vst [vmem:[%s312 + $0x60] sm:$0xf] %v1842
          %1907 = vst [vmem:[%s312 + $0x64] sm:$0xf] %v1843
          %1908 = vst [vmem:[%s312 + $0x68] sm:$0xf] %v1844
          %1909 = vst [vmem:[%s312 + $0x6c] sm:$0xf] %v1845
          %1910 = vst [vmem:[%s312 + $0x70] sm:$0xf] %v1846
          %1911 = vst [vmem:[%s312 + $0x74] sm:$0xf] %v1847
          %1912 = vst [vmem:[%s312 + $0x78] sm:$0xf] %v1848
          %1913 = vst [vmem:[%s312 + $0x7c] sm:$0xf] %v1849
        $region60: #{tpu_custom_call.1} parent=35 // pred_fallthru
          _
        %s1914 = sand.u32 %s139, 1
        %s1915 = scalar_lea.sflag [#allocation4], %s1914
        %s1916 = sand.u32 %s139, 1
        %s1917 = smul.addr %s1916, 512
        %s1918 = scalar_lea.vmem [#allocation10], %s1917
        %s1919 = sand.u32 %s165, 1
        %s1920 = scalar_lea.sflag [#allocation12], %s1919
        %s1921 = sand.u32 %s165, 1
        %s1922 = smul.addr %s1921, 128
        %s1923 = scalar_lea.vmem [#allocation11], %s1922
        // Predicated region
        $region61: #{tpu_custom_call.1} parent=35 // pred_check
          %p1924 = pneg %p149
        $region62: #{tpu_custom_call.1} parent=35 // pred_check_branch
          %1926 = sbr.rel (%p1924) target = $region64
        $region63: #{tpu_custom_call.1} parent=35 // pred_region
          %s1927 = smul.u32 32, %s32
          %s1929 = ssub.s32 8192, 8192
          %1930 = vsyncadd %s1915, %s1929
          %s1931 = smul.addr %s1927, 2
          %s1932 = smul.addr %s1931, 128
          %s1933 = scalar_lea.hbm %s4, %s1932
          %s1934 = sshll.u32 %s1918, 4
          %s1935 = int_to_ptr.vmem [resolvable:$true] %s1934
          %1940 = dma.vmem_to_hbm [thread:$0]  %s1935, 8192, %s1933, %s1915, 256, 256, 16
        $region64: #{tpu_custom_call.1} parent=35 // pred_fallthru
          _
        // Predicated region
        $region65: #{tpu_custom_call.1} parent=35 // pred_check
          %p1941 = pneg %p175
        $region66: #{tpu_custom_call.1} parent=35 // pred_check_branch
          %1943 = sbr.rel (%p1941) target = $region68
        $region67: #{tpu_custom_call.1} parent=35 // pred_region
          %s1944 = smul.u32 32, %s32
          %s1946 = ssub.s32 2048, 2048
          %1947 = vsyncadd %s1920, %s1946
          %s1948 = smul.addr %s1944, 64
          %s1949 = scalar_lea.hbm %s5, %s1948
          %s1950 = sshll.u32 %s1923, 4
          %s1951 = int_to_ptr.vmem [resolvable:$true] %s1950
          %1956 = dma.vmem_to_hbm [thread:$0]  %s1951, 2048, %s1949, %s1920, 64, 64, 4
        $region68: #{tpu_custom_call.1} parent=35 // pred_fallthru
          _
      $region36: #{tpu_custom_call.1} parent=5 // pred_fallthru
        _
      %p1957 = scmp.le.s32.totalorder 2, %s23
      // Predicated region
      $region69: #{tpu_custom_call.1} parent=5 // pred_check
        %p1958 = pneg %p1957
      $region70: #{tpu_custom_call.1} parent=5 // pred_check_branch
        %1960 = sbr.rel (%p1958) target = $region72
      $region71: #{tpu_custom_call.1} parent=5 // pred_region
        %s1961 = ssub.s32 %s23, 2
        // Predicated region
        $region73: #{tpu_custom_call.1} parent=71 // pred_check
          %p1962 = pneg %p155
        $region74: #{tpu_custom_call.1} parent=71 // pred_check_branch
          %1964 = sbr.rel (%p1962) target = $region76
        $region75: #{tpu_custom_call.1} parent=71 // pred_region
          %s1965 = sand.u32 %s140, 1
          %s1966 = scalar_lea.sflag [#allocation4], %s1965
          %s1967 = sand.u32 %s140, 1
          %s1968 = smul.addr %s1967, 512
          %s1969 = scalar_lea.vmem [#allocation10], %s1968
          %1970 = dma.done %s1966, 8192
        $region76: #{tpu_custom_call.1} parent=71 // pred_fallthru
          _
        // Predicated region
        $region77: #{tpu_custom_call.1} parent=71 // pred_check
          %p1971 = pneg %p181
        $region78: #{tpu_custom_call.1} parent=71 // pred_check_branch
          %1973 = sbr.rel (%p1971) target = $region80
        $region79: #{tpu_custom_call.1} parent=71 // pred_region
          %s1974 = sand.u32 %s166, 1
          %s1975 = scalar_lea.sflag [#allocation12], %s1974
          %s1976 = sand.u32 %s166, 1
          %s1977 = smul.addr %s1976, 128
          %s1978 = scalar_lea.vmem [#allocation11], %s1977
          %1979 = dma.done %s1975, 2048
        $region80: #{tpu_custom_call.1} parent=71 // pred_fallthru
          _
      $region72: #{tpu_custom_call.1} parent=5 // pred_fallthru
        _
    $region6: #{tpu_custom_call.1} parent=1 // loop_footer
      %s27 = sadd.s32 1, %s23
    $region7: #{tpu_custom_call.1} parent=1 // loop_footer_branch
      %22 = sbr.rel target = $region3
    $region8: #{tpu_custom_call.1} parent=1 // loop_exit
      _
    %1980 = vsyncpa [#allocation3], 1
    %s1981 = scalar_lea.sflag [#allocation3], 1
    %1982 = vsyncpa %s1981, 1
    %1983 = vsyncpa [#allocation6], 1
    %1984 = vsyncpa [#allocation9], 1
    %1985 = vsyncpa [#allocation4], 1
    %s1986 = scalar_lea.sflag [#allocation4], 1
    %1987 = vsyncpa %s1986, 1
    %1988 = vsyncpa [#allocation12], 1
    %s1989 = scalar_lea.sflag [#allocation12], 1
    %1990 = vsyncpa %s1989, 1

</llo_original>
